<compile_context>
chip_gen: v7x
topology: tpu7x:2x2x1
jax: 0.10.0
libtpu: 0.0.40
codegen_flags: <defaults>
</compile_context>

<pallas_src>
import functools

import jax
import jax.numpy as jnp
from jax.experimental import pallas as pl
from jax.experimental.pallas import tpu as pltpu


@functools.lru_cache(maxsize=None)
def _vmem_limit_bytes():
    """Per-generation VMEM budget: ~75% of physical, capped at 100 MiB.

    v5e/v6e (128 MiB physical) -> 96 MiB; v7x (64 MiB physical) -> 48 MiB.
    """
    try:
        cap = int(pltpu.get_tpu_info().vmem_capacity_bytes)
    except Exception:
        cap = 64 * 1024 * 1024
    return min((cap * 3) // 4, 100 * 1024 * 1024)


# ------------------- fused Conv3d + bias + ReLU + MaxPool3d ------------------
def _conv_relu_pool_kernel(x_ref, xh0_ref, xh1_ref, w_ref, b_ref, o_ref, *,
                           pool_k, apply_relu=True):
    """One grid step = one POOLED output D-plane (k conv D-rows).

    x_ref   : (k, H, W, Cin)      main input block (conv planes pd*k .. pd*k+k-1)
    xh0/xh1 : (1, H, W, Cin)      D-halo planes pd*k+k and pd*k+k+1
    w_ref   : (3, 3, 3*Cin, Cout) kw-merged conv weights (bf16)
    b_ref   : (1, Cout)           bias (f32)
    o_ref   : (1, hop, wop, Cout) pooled output plane (bf16)
    """
    k = pool_k
    _, H, W, cin = x_ref.shape
    _, hop, wop, cout = o_ref.shape
    ho, wo = H - 2, W - 2
    kin = 3 * cin

    # The k+2 input D-planes this pooled plane depends on.
    planes = [x_ref[j] for j in range(k)] + [xh0_ref[0], xh1_ref[0]]

    # Hoisted, kw-merged, row-flattened patch planes (one per input plane):
    #   patch[h*wo + w, kw*Cin + ci] = plane[h, w + kw, ci]
    # Built once per plane and reused by every (kd, kh) tap of all k conv rows.
    pdt = jnp.float32 if cin == 1 else x_ref.dtype
    patches = [
        jnp.concatenate(
            [p[:, 0:wo, :].astype(pdt),
             p[:, 1:1 + wo, :].astype(pdt),
             p[:, 2:2 + wo, :].astype(pdt)], axis=-1).reshape(H * wo, kin)
        for p in planes
    ]

    bias = b_ref[...]                       # (1, Cout) f32

    pooled = None
    for dd in range(k):                     # conv D-row inside the pool window
        if cin == 1:
            # conv1: merge all 27 taps into one K=27 MXU dot per plane.
            lhs = jnp.concatenate(
                [patches[dd + kd][kh * wo:(kh + ho) * wo]
                 for kd in range(3) for kh in range(3)], axis=-1)
            acc = jnp.dot(lhs, w_ref[...].reshape(9 * kin, cout).astype(pdt),
                          preferred_element_type=jnp.float32)
        else:
            # 9 consecutive MXU dots, K = 3*Cin, M = ho*wo rows streamed per
            # weight-tap push (weight-stationary; lane-dense for Cout=128).
            acc = None
            for kd in range(3):
                for kh in range(3):
                    lhs = patches[dd + kd][kh * wo:(kh + ho) * wo]
                    tap = jnp.dot(lhs, w_ref[kd, kh],
                                  preferred_element_type=jnp.float32)
                    acc = tap if acc is None else acc + tap
        acc = acc + bias                    # once per plane, not per row
        if apply_relu:
            acc = jnp.maximum(acc, 0.0)
        plane = acc.reshape(ho, wo, cout)

        if k == 1:
            dplane = plane
        else:
            # MaxPool over (H, W), kernel = stride = k, floor mode (PyTorch).
            p = plane[:k * hop, :k * wop, :]
            p = p.reshape(hop, k, k * wop, cout).max(axis=1)   # H pool
            p = p.reshape(hop, wop, k, cout).max(axis=2)       # W pool
            dplane = p
        pooled = dplane if pooled is None else jnp.maximum(pooled, dplane)

    # Single store of the whole pooled plane (no -inf init, no RMW).
    o_ref[...] = pooled.reshape(1, hop, wop, cout).astype(o_ref.dtype)


def conv_relu_pool(x, w, b, pool_k=1, *, apply_relu=True):
    """MaxPool3d(pool_k)(ReLU(Conv3d_3x3x3_valid(x) + b)).

    x: (D, H, W, Cin) bf16;  w: (3, 3, 3*Cin, Cout) bf16;  b: (1, Cout) f32.
    pool_k == 1 means no pooling.  Pool flooring matches PyTorch.
    """
    D, H, W, cin = x.shape
    cout = w.shape[-1]
    do, ho, wo = D - 2, H - 2, W - 2
    k = pool_k
    dop, hop, wop = do // k, ho // k, wo // k
    assert min(do, ho, wo) >= 1 and min(dop, hop, wop) >= 1

    # One Blocked block of k planes + two size-1 halo views gives the D halo
    # with plain BlockSpecs (auto-pipelined, no manual DMA / semaphores).
    main_spec = pl.BlockSpec((k, H, W, cin), lambda pd: (pd, 0, 0, 0))
    halo_specs = [
        pl.BlockSpec((1, H, W, cin), lambda pd, j=j: (pd * k + k + j, 0, 0, 0))
        for j in range(2)
    ]
    w_spec = pl.BlockSpec(w.shape, lambda pd: (0, 0, 0, 0))
    b_spec = pl.BlockSpec(b.shape, lambda pd: (0, 0))
    out_spec = pl.BlockSpec((1, hop, wop, cout), lambda pd: (pd, 0, 0, 0))

    kernel = functools.partial(_conv_relu_pool_kernel, pool_k=k,
                               apply_relu=apply_relu)
    return pl.pallas_call(
        kernel,
        grid=(dop,),
        in_specs=[main_spec] + halo_specs + [w_spec, b_spec],
        out_specs=out_spec,
        out_shape=jax.ShapeDtypeStruct((dop, hop, wop, cout), jnp.bfloat16),
        compiler_params=pltpu.CompilerParams(
            dimension_semantics=("parallel",),
            vmem_limit_bytes=_vmem_limit_bytes()),
    )(x, x, x, w, b)


# ------------------------------ fused FC head --------------------------------
def _mlp_kernel(x_ref, w1_ref, b1_ref, w2_ref, b2_ref, w3_ref, b3_ref, o_ref):
    h = jnp.dot(x_ref[...], w1_ref[...],
                preferred_element_type=jnp.float32) + b1_ref[...]
    h = jnp.maximum(h, 0.0).astype(jnp.bfloat16)
    h = jnp.dot(h, w2_ref[...],
                preferred_element_type=jnp.float32) + b2_ref[...]
    h = jnp.maximum(h, 0.0).astype(jnp.bfloat16)
    y = jnp.dot(h, w3_ref[...],
                preferred_element_type=jnp.float32) + b3_ref[...]
    o_ref[...] = y.astype(o_ref.dtype)


def mlp(x, fc1, fc2, fc3):
    """f3 = fc3(relu(fc2(relu(fc1(x))))) in a single pallas_call."""
    (w1, b1), (w2, b2), (w3, b3) = fc1, fc2, fc3
    n = x.shape[0]
    fout = w3.shape[1]

    def full(shape):
        return pl.BlockSpec(shape, lambda i, _s=shape: (0,) * len(_s))

    return pl.pallas_call(
        _mlp_kernel,
        grid=(1,),
        in_specs=[full(x.shape), full(w1.shape), full(b1.shape),
                  full(w2.shape), full(b2.shape), full(w3.shape), full(b3.shape)],
        out_specs=full((n, fout)),
        out_shape=jax.ShapeDtypeStruct((n, fout), jnp.float32),
        compiler_params=pltpu.CompilerParams(
            dimension_semantics=("arbitrary",),
            vmem_limit_bytes=_vmem_limit_bytes()),
    )(x, w1, b1, w2, b2, w3, b3)


# ------------------------------- architecture --------------------------------
# (name, Cin, Cout, pool kernel applied AFTER the conv+relu; 1 = no pool)
CONV_STAGES = (
    ("conv1", 1, 32, 1),
    ("conv2", 32, 32, 3),    # pool1
    ("conv3", 32, 64, 3),    # pool2
    ("conv4", 64, 128, 2),   # pool3  (undefined self.pool -> pool3, see header)
    ("conv5", 128, 128, 3),  # pool4
    ("conv6", 128, 128, 2),  # pool5
)


def stages_for_input(s):
    """Stages of the declared chain PyTorch could actually run on an s^3 input
    (conv needs >= 3, pool needs >= its kernel), plus the flattened feature
    count.  For s >= 280 this is the entire declared stack (features = 128)."""
    stages, cout = [], 1
    for st in CONV_STAGES:
        _name, _cin, c, k = st
        if s < 3 or (s - 2) < k:
            break
        s = (s - 2) // k
        cout = c
        stages.append(st)
    return tuple(stages), (s ** 3) * cout


def _uniform(key, shape, fan_in, dtype):
    bound = 1.0 / (fan_in ** 0.5)
    return jax.random.uniform(key, shape, jnp.float32, -bound, bound).astype(dtype)


def init_params(key, flat_features):
    """PyTorch-style uniform init.  Conv weights stored kw-merged as
    (3, 3, 3*Cin, Cout) bf16; FC weights as (Fin, Fout) bf16; biases f32."""
    params = {}
    keys = jax.random.split(key, 2 * (len(CONV_STAGES) + 3))
    ki = 0
    for name, cin, cout, _pool in CONV_STAGES:
        fan_in = cin * 27
        w = _uniform(keys[ki], (3, 3, 3, cin, cout), fan_in, jnp.bfloat16)
        params[name] = (w.reshape(3, 3, 3 * cin, cout),
                        _uniform(keys[ki + 1], (1, cout), fan_in, jnp.float32))
        ki += 2
    for n, (fin, fout) in enumerate(
            [(flat_features, 256), (256, 128), (128, 1)], start=1):
        params[f"fc{n}"] = (_uniform(keys[ki], (fin, fout), fin, jnp.bfloat16),
                            _uniform(keys[ki + 1], (1, fout), fin, jnp.float32))
        ki += 2
    return params


def net_forward(params, x, stages):
    """x: (N=1, C=1, D, H, W) float32, like the PyTorch NCDHW input."""
    v = jnp.transpose(x[0], (1, 2, 3, 0)).astype(jnp.bfloat16)   # (D, H, W, 1)
    for name, _cin, _cout, pool_k in stages:
        w, b = params[name]
        v = conv_relu_pool(v, w, b, pool_k=pool_k)
    # PyTorch flattens an NCDHW tensor in (C, D, H, W) order.
    flat = jnp.transpose(v, (3, 0, 1, 2)).reshape(1, -1)
    f3 = mlp(flat, params["fc1"], params["fc2"], params["fc3"])
    # TODO(synk): original forward returns undefined `f4`; returning f3.
    return f3


# ------------------------------ sanity checks ---------------------------------
def _check_kernels():
    keys = jax.random.split(jax.random.PRNGKey(1), 10)

    def conv_ref(xx, ww, bb):
        y = jax.lax.conv_general_dilated(
            xx.astype(jnp.float32)[None], ww.astype(jnp.float32),
            window_strides=(1, 1, 1), padding="VALID",
            dimension_numbers=("NDHWC", "DHWIO", "NDHWC"))[0] + bb[0]
        return jnp.maximum(y, 0.0)

    # Cin > 1, no pool.
    x = jax.random.normal(keys[0], (6, 8, 10, 4), jnp.float32).astype(jnp.bfloat16)
    wl = (jax.random.normal(keys[1], (3, 3, 3, 4, 16), jnp.float32) * 0.2
          ).astype(jnp.bfloat16)
    b = jax.random.normal(keys[2], (1, 16), jnp.float32) * 0.1
    wk = wl.reshape(3, 3, 12, 16)
    got = conv_relu_pool(x, wk, b, pool_k=1).astype(jnp.float32)
    ref = conv_ref(x, wl, b)
    assert jnp.allclose(got, ref, atol=3e-2, rtol=3e-2), "conv3d(+relu) mismatch"

    # Cin > 1, pool 2 (with flooring on W).
    x2 = jax.random.normal(keys[3], (8, 10, 13, 4), jnp.float32).astype(jnp.bfloat16)
    got2 = conv_relu_pool(x2, wk, b, pool_k=2).astype(jnp.float32)
    rc = conv_ref(x2, wl, b)                                   # (6, 8, 11, 16)
    rp = rc[:6, :8, :10].reshape(3, 2, 4, 2, 5, 2, 16).max(axis=(1, 3, 5))
    assert jnp.allclose(got2, rp, atol=3e-2, rtol=3e-2), "conv3d+maxpool2 mismatch"

    # Cin == 1 (merged K=27 MXU path), pool 3.
    x3 = jax.random.normal(keys[4], (11, 12, 13, 1), jnp.float32).astype(jnp.bfloat16)
    wl1 = (jax.random.normal(keys[5], (3, 3, 3, 1, 8), jnp.float32) * 0.3
           ).astype(jnp.bfloat16)
    b1 = jax.random.normal(keys[6], (1, 8), jnp.float32) * 0.1
    got3 = conv_relu_pool(x3, wl1.reshape(3, 3, 3, 8), b1, pool_k=3
                          ).astype(jnp.float32)
    rc3 = conv_ref(x3, wl1, b1)                                # (9, 10, 11, 8)
    rp3 = rc3[:9, :9, :9].reshape(3, 3, 3, 3, 3, 3, 8).max(axis=(1, 3, 5))
    assert jnp.allclose(got3, rp3, atol=3e-2, rtol=3e-2), \
        "conv3d+maxpool3 (cin=1) mismatch"

    # Fused MLP.
    xf = jax.random.normal(keys[7], (1, 32), jnp.float32).astype(jnp.bfloat16)
    fk = jax.random.split(keys[8], 6)
    fcs = []
    for i, (fi, fo) in enumerate([(32, 16), (16, 8), (8, 1)]):
        wf = (jax.random.normal(fk[2 * i], (fi, fo), jnp.float32) * 0.2
              ).astype(jnp.bfloat16)
        bf = jax.random.normal(fk[2 * i + 1], (1, fo), jnp.float32) * 0.1
        fcs.append((wf, bf))
    got4 = mlp(xf, *fcs)
    h = jnp.maximum(xf.astype(jnp.float32) @ fcs[0][0].astype(jnp.float32)
                    + fcs[0][1], 0.0)
    h = jnp.maximum(h.astype(jnp.bfloat16).astype(jnp.float32)
                    @ fcs[1][0].astype(jnp.float32) + fcs[1][1], 0.0)
    refm = (h.astype(jnp.bfloat16).astype(jnp.float32)
            @ fcs[2][0].astype(jnp.float32) + fcs[2][1])
    assert jnp.allclose(got4, refm, atol=3e-2, rtol=3e-2), "mlp mismatch"


# ----------------------------------- main -------------------------------------
if __name__ == "__main__":
    _check_kernels()

    # 46^3 runs conv1..conv4 (+pool1..pool3) and the full FC head with exactly
    # 128 flattened features -- the same FC sizes the full 280^3 chain yields.
    # The full declared chain (min input 280^3, ~2.7 GB activations) uses the
    # same kernels but exceeds the sandbox time budget (see header TODO).
    S = 46
    stages, flat_features = stages_for_input(S)

    key = jax.random.PRNGKey(0)
    pkey, xkey = jax.random.split(key)
    params = init_params(pkey, flat_features)
    x = jax.random.normal(xkey, (1, 1, S, S, S), jnp.float32)   # NCDHW, batch=1

    fwd = jax.jit(lambda p, xx: net_forward(p, xx, stages))
    out = jax.block_until_ready(fwd(params, x))

    assert out.shape == (1, 1) and out.dtype == jnp.float32
    assert bool(jnp.isfinite(out).all())
    print("KERNEL_OK")
</pallas_src>

<mosaic_0001>
module attributes {stable_mosaic.version = 11 : i64} {
  func.func @_conv_relu_pool_kernel(%arg0: i32, %arg1: memref<1x8x10x4xbf16, #tpu.memory_space<vmem>>, %arg2: memref<1x8x10x4xbf16, #tpu.memory_space<vmem>>, %arg3: memref<1x8x10x4xbf16, #tpu.memory_space<vmem>>, %arg4: memref<3x3x12x16xbf16, #tpu.memory_space<vmem>>, %arg5: memref<1x16xf32, #tpu.memory_space<vmem>>, %arg6: memref<1x6x8x16xbf16, #tpu.memory_space<vmem>>) attributes {dimension_semantics = [#tpu.dimension_semantics<parallel>], iteration_bounds = array<i64: 4>, scalar_prefetch = 0 : i64, scratch_operands = 0 : i64, tpu.core_type = #tpu.core_type<tc>, window_params = [{transform_indices = @transform_0, window_bounds = array<i64: 1, 8, 10, 4>}, {transform_indices = @transform_1, window_bounds = array<i64: 1, 8, 10, 4>}, {transform_indices = @transform_2, window_bounds = array<i64: 1, 8, 10, 4>}, {pipeline_mode = #tpu.pipeline_mode<synchronous>, transform_indices = @transform_3, window_bounds = array<i64: 3, 3, 12, 16>}, {pipeline_mode = #tpu.pipeline_mode<synchronous>, transform_indices = @transform_4, window_bounds = array<i64: 1, 16>}, {transform_indices = @transform_5, window_bounds = array<i64: 1, 6, 8, 16>}]} {
    %c0 = arith.constant 0 : index
    %c0_0 = arith.constant 0 : index
    %c0_1 = arith.constant 0 : index
    %c0_2 = arith.constant 0 : index
    %0 = vector.load %arg1[%c0, %c0_0, %c0_1, %c0_2] : memref<1x8x10x4xbf16, #tpu.memory_space<vmem>>, vector<1x8x10x4xbf16>
    %1 = vector.shape_cast %0 : vector<1x8x10x4xbf16> to vector<8x10x4xbf16>
    %c0_3 = arith.constant 0 : index
    %c0_4 = arith.constant 0 : index
    %c0_5 = arith.constant 0 : index
    %c0_6 = arith.constant 0 : index
    %2 = vector.load %arg2[%c0_3, %c0_4, %c0_5, %c0_6] : memref<1x8x10x4xbf16, #tpu.memory_space<vmem>>, vector<1x8x10x4xbf16>
    %3 = vector.shape_cast %2 : vector<1x8x10x4xbf16> to vector<8x10x4xbf16>
    %c0_7 = arith.constant 0 : index
    %c0_8 = arith.constant 0 : index
    %c0_9 = arith.constant 0 : index
    %c0_10 = arith.constant 0 : index
    %4 = vector.load %arg3[%c0_7, %c0_8, %c0_9, %c0_10] : memref<1x8x10x4xbf16, #tpu.memory_space<vmem>>, vector<1x8x10x4xbf16>
    %5 = vector.shape_cast %4 : vector<1x8x10x4xbf16> to vector<8x10x4xbf16>
    %6 = vector.extract_strided_slice %1 {offsets = [0, 0, 0], sizes = [8, 8, 4], strides = [1, 1, 1]} : vector<8x10x4xbf16> to vector<8x8x4xbf16>
    %7 = vector.extract_strided_slice %1 {offsets = [0, 1, 0], sizes = [8, 8, 4], strides = [1, 1, 1]} : vector<8x10x4xbf16> to vector<8x8x4xbf16>
    %8 = vector.extract_strided_slice %1 {offsets = [0, 2, 0], sizes = [8, 8, 4], strides = [1, 1, 1]} : vector<8x10x4xbf16> to vector<8x8x4xbf16>
    %9 = tpu.concatenate %6, %7, %8 in 2 : vector<8x8x4xbf16>, vector<8x8x4xbf16>, vector<8x8x4xbf16> -> vector<8x8x12xbf16>
    %10 = vector.shape_cast %9 : vector<8x8x12xbf16> to vector<64x12xbf16>
    %11 = vector.extract_strided_slice %3 {offsets = [0, 0, 0], sizes = [8, 8, 4], strides = [1, 1, 1]} : vector<8x10x4xbf16> to vector<8x8x4xbf16>
    %12 = vector.extract_strided_slice %3 {offsets = [0, 1, 0], sizes = [8, 8, 4], strides = [1, 1, 1]} : vector<8x10x4xbf16> to vector<8x8x4xbf16>
    %13 = vector.extract_strided_slice %3 {offsets = [0, 2, 0], sizes = [8, 8, 4], strides = [1, 1, 1]} : vector<8x10x4xbf16> to vector<8x8x4xbf16>
    %14 = tpu.concatenate %11, %12, %13 in 2 : vector<8x8x4xbf16>, vector<8x8x4xbf16>, vector<8x8x4xbf16> -> vector<8x8x12xbf16>
    %15 = vector.shape_cast %14 : vector<8x8x12xbf16> to vector<64x12xbf16>
    %16 = vector.extract_strided_slice %5 {offsets = [0, 0, 0], sizes = [8, 8, 4], strides = [1, 1, 1]} : vector<8x10x4xbf16> to vector<8x8x4xbf16>
    %17 = vector.extract_strided_slice %5 {offsets = [0, 1, 0], sizes = [8, 8, 4], strides = [1, 1, 1]} : vector<8x10x4xbf16> to vector<8x8x4xbf16>
    %18 = vector.extract_strided_slice %5 {offsets = [0, 2, 0], sizes = [8, 8, 4], strides = [1, 1, 1]} : vector<8x10x4xbf16> to vector<8x8x4xbf16>
    %19 = tpu.concatenate %16, %17, %18 in 2 : vector<8x8x4xbf16>, vector<8x8x4xbf16>, vector<8x8x4xbf16> -> vector<8x8x12xbf16>
    %20 = vector.shape_cast %19 : vector<8x8x12xbf16> to vector<64x12xbf16>
    %c0_11 = arith.constant 0 : index
    %c0_12 = arith.constant 0 : index
    %21 = vector.load %arg5[%c0_11, %c0_12] : memref<1x16xf32, #tpu.memory_space<vmem>>, vector<1x16xf32>
    %22 = vector.extract_strided_slice %10 {offsets = [0, 0], sizes = [48, 12], strides = [1, 1]} : vector<64x12xbf16> to vector<48x12xbf16>
    %c0_13 = arith.constant 0 : index
    %c0_14 = arith.constant 0 : index
    %c0_15 = arith.constant 0 : index
    %c0_16 = arith.constant 0 : index
    %23 = vector.load %arg4[%c0_13, %c0_14, %c0_15, %c0_16] : memref<3x3x12x16xbf16, #tpu.memory_space<vmem>>, vector<1x1x12x16xbf16>
    %24 = vector.shape_cast %23 : vector<1x1x12x16xbf16> to vector<12x16xbf16>
    %cst = arith.constant dense<0.000000e+00> : vector<48x16xf32>
    %25 = tpu.matmul %22, %24, %cst {dimension_numbers = #tpu.dot_dimension_numbers<[1], [0], [0], [1], [0, 0, 1, 1], [], []>} : vector<48x12xbf16>, vector<12x16xbf16>, vector<48x16xf32> -> vector<48x16xf32>
    %26 = vector.extract_strided_slice %10 {offsets = [8, 0], sizes = [48, 12], strides = [1, 1]} : vector<64x12xbf16> to vector<48x12xbf16>
    %c0_17 = arith.constant 0 : index
    %c1 = arith.constant 1 : index
    %c0_18 = arith.constant 0 : index
    %c0_19 = arith.constant 0 : index
    %27 = vector.load %arg4[%c0_17, %c1, %c0_18, %c0_19] : memref<3x3x12x16xbf16, #tpu.memory_space<vmem>>, vector<1x1x12x16xbf16>
    %28 = vector.shape_cast %27 : vector<1x1x12x16xbf16> to vector<12x16xbf16>
    %cst_20 = arith.constant dense<0.000000e+00> : vector<48x16xf32>
    %29 = tpu.matmul %26, %28, %cst_20 {dimension_numbers = #tpu.dot_dimension_numbers<[1], [0], [0], [1], [0, 0, 1, 1], [], []>} : vector<48x12xbf16>, vector<12x16xbf16>, vector<48x16xf32> -> vector<48x16xf32>
    %30 = arith.addf %25, %29 : vector<48x16xf32>
    %31 = vector.extract_strided_slice %10 {offsets = [16, 0], sizes = [48, 12], strides = [1, 1]} : vector<64x12xbf16> to vector<48x12xbf16>
    %c0_21 = arith.constant 0 : index
    %c2 = arith.constant 2 : index
    %c0_22 = arith.constant 0 : index
    %c0_23 = arith.constant 0 : index
    %32 = vector.load %arg4[%c0_21, %c2, %c0_22, %c0_23] : memref<3x3x12x16xbf16, #tpu.memory_space<vmem>>, vector<1x1x12x16xbf16>
    %33 = vector.shape_cast %32 : vector<1x1x12x16xbf16> to vector<12x16xbf16>
    %cst_24 = arith.constant dense<0.000000e+00> : vector<48x16xf32>
    %34 = tpu.matmul %31, %33, %cst_24 {dimension_numbers = #tpu.dot_dimension_numbers<[1], [0], [0], [1], [0, 0, 1, 1], [], []>} : vector<48x12xbf16>, vector<12x16xbf16>, vector<48x16xf32> -> vector<48x16xf32>
    %35 = arith.addf %30, %34 : vector<48x16xf32>
    %36 = vector.extract_strided_slice %15 {offsets = [0, 0], sizes = [48, 12], strides = [1, 1]} : vector<64x12xbf16> to vector<48x12xbf16>
    %c1_25 = arith.constant 1 : index
    %c0_26 = arith.constant 0 : index
    %c0_27 = arith.constant 0 : index
    %c0_28 = arith.constant 0 : index
    %37 = vector.load %arg4[%c1_25, %c0_26, %c0_27, %c0_28] : memref<3x3x12x16xbf16, #tpu.memory_space<vmem>>, vector<1x1x12x16xbf16>
    %38 = vector.shape_cast %37 : vector<1x1x12x16xbf16> to vector<12x16xbf16>
    %cst_29 = arith.constant dense<0.000000e+00> : vector<48x16xf32>
    %39 = tpu.matmul %36, %38, %cst_29 {dimension_numbers = #tpu.dot_dimension_numbers<[1], [0], [0], [1], [0, 0, 1, 1], [], []>} : vector<48x12xbf16>, vector<12x16xbf16>, vector<48x16xf32> -> vector<48x16xf32>
    %40 = arith.addf %35, %39 : vector<48x16xf32>
    %41 = vector.extract_strided_slice %15 {offsets = [8, 0], sizes = [48, 12], strides = [1, 1]} : vector<64x12xbf16> to vector<48x12xbf16>
    %c1_30 = arith.constant 1 : index
    %c1_31 = arith.constant 1 : index
    %c0_32 = arith.constant 0 : index
    %c0_33 = arith.constant 0 : index
    %42 = vector.load %arg4[%c1_30, %c1_31, %c0_32, %c0_33] : memref<3x3x12x16xbf16, #tpu.memory_space<vmem>>, vector<1x1x12x16xbf16>
    %43 = vector.shape_cast %42 : vector<1x1x12x16xbf16> to vector<12x16xbf16>
    %cst_34 = arith.constant dense<0.000000e+00> : vector<48x16xf32>
    %44 = tpu.matmul %41, %43, %cst_34 {dimension_numbers = #tpu.dot_dimension_numbers<[1], [0], [0], [1], [0, 0, 1, 1], [], []>} : vector<48x12xbf16>, vector<12x16xbf16>, vector<48x16xf32> -> vector<48x16xf32>
    %45 = arith.addf %40, %44 : vector<48x16xf32>
    %46 = vector.extract_strided_slice %15 {offsets = [16, 0], sizes = [48, 12], strides = [1, 1]} : vector<64x12xbf16> to vector<48x12xbf16>
    %c1_35 = arith.constant 1 : index
    %c2_36 = arith.constant 2 : index
    %c0_37 = arith.constant 0 : index
    %c0_38 = arith.constant 0 : index
    %47 = vector.load %arg4[%c1_35, %c2_36, %c0_37, %c0_38] : memref<3x3x12x16xbf16, #tpu.memory_space<vmem>>, vector<1x1x12x16xbf16>
    %48 = vector.shape_cast %47 : vector<1x1x12x16xbf16> to vector<12x16xbf16>
    %cst_39 = arith.constant dense<0.000000e+00> : vector<48x16xf32>
    %49 = tpu.matmul %46, %48, %cst_39 {dimension_numbers = #tpu.dot_dimension_numbers<[1], [0], [0], [1], [0, 0, 1, 1], [], []>} : vector<48x12xbf16>, vector<12x16xbf16>, vector<48x16xf32> -> vector<48x16xf32>
    %50 = arith.addf %45, %49 : vector<48x16xf32>
    %51 = vector.extract_strided_slice %20 {offsets = [0, 0], sizes = [48, 12], strides = [1, 1]} : vector<64x12xbf16> to vector<48x12xbf16>
    %c2_40 = arith.constant 2 : index
    %c0_41 = arith.constant 0 : index
    %c0_42 = arith.constant 0 : index
    %c0_43 = arith.constant 0 : index
    %52 = vector.load %arg4[%c2_40, %c0_41, %c0_42, %c0_43] : memref<3x3x12x16xbf16, #tpu.memory_space<vmem>>, vector<1x1x12x16xbf16>
    %53 = vector.shape_cast %52 : vector<1x1x12x16xbf16> to vector<12x16xbf16>
    %cst_44 = arith.constant dense<0.000000e+00> : vector<48x16xf32>
    %54 = tpu.matmul %51, %53, %cst_44 {dimension_numbers = #tpu.dot_dimension_numbers<[1], [0], [0], [1], [0, 0, 1, 1], [], []>} : vector<48x12xbf16>, vector<12x16xbf16>, vector<48x16xf32> -> vector<48x16xf32>
    %55 = arith.addf %50, %54 : vector<48x16xf32>
    %56 = vector.extract_strided_slice %20 {offsets = [8, 0], sizes = [48, 12], strides = [1, 1]} : vector<64x12xbf16> to vector<48x12xbf16>
    %c2_45 = arith.constant 2 : index
    %c1_46 = arith.constant 1 : index
    %c0_47 = arith.constant 0 : index
    %c0_48 = arith.constant 0 : index
    %57 = vector.load %arg4[%c2_45, %c1_46, %c0_47, %c0_48] : memref<3x3x12x16xbf16, #tpu.memory_space<vmem>>, vector<1x1x12x16xbf16>
    %58 = vector.shape_cast %57 : vector<1x1x12x16xbf16> to vector<12x16xbf16>
    %cst_49 = arith.constant dense<0.000000e+00> : vector<48x16xf32>
    %59 = tpu.matmul %56, %58, %cst_49 {dimension_numbers = #tpu.dot_dimension_numbers<[1], [0], [0], [1], [0, 0, 1, 1], [], []>} : vector<48x12xbf16>, vector<12x16xbf16>, vector<48x16xf32> -> vector<48x16xf32>
    %60 = arith.addf %55, %59 : vector<48x16xf32>
    %61 = vector.extract_strided_slice %20 {offsets = [16, 0], sizes = [48, 12], strides = [1, 1]} : vector<64x12xbf16> to vector<48x12xbf16>
    %c2_50 = arith.constant 2 : index
    %c2_51 = arith.constant 2 : index
    %c0_52 = arith.constant 0 : index
    %c0_53 = arith.constant 0 : index
    %62 = vector.load %arg4[%c2_50, %c2_51, %c0_52, %c0_53] : memref<3x3x12x16xbf16, #tpu.memory_space<vmem>>, vector<1x1x12x16xbf16>
    %63 = vector.shape_cast %62 : vector<1x1x12x16xbf16> to vector<12x16xbf16>
    %cst_54 = arith.constant dense<0.000000e+00> : vector<48x16xf32>
    %64 = tpu.matmul %61, %63, %cst_54 {dimension_numbers = #tpu.dot_dimension_numbers<[1], [0], [0], [1], [0, 0, 1, 1], [], []>} : vector<48x12xbf16>, vector<12x16xbf16>, vector<48x16xf32> -> vector<48x16xf32>
    %65 = arith.addf %60, %64 : vector<48x16xf32>
    %66 = vector.broadcast %21 : vector<1x16xf32> to vector<48x16xf32>
    %67 = arith.addf %65, %66 : vector<48x16xf32>
    %cst_55 = arith.constant 0.000000e+00 : f32
    %68 = vector.broadcast %cst_55 : f32 to vector<48x16xf32>
    %69 = arith.maximumf %67, %68 : vector<48x16xf32>
    %70 = vector.shape_cast %69 : vector<48x16xf32> to vector<6x8x16xf32>
    %71 = vector.shape_cast %70 : vector<6x8x16xf32> to vector<1x6x8x16xf32>
    %72 = arith.truncf %71 : vector<1x6x8x16xf32> to vector<1x6x8x16xbf16>
    %c0_56 = arith.constant 0 : index
    %c0_57 = arith.constant 0 : index
    %c0_58 = arith.constant 0 : index
    %c0_59 = arith.constant 0 : index
    %73 = vector.load %arg6[%c0_56, %c0_57, %c0_58, %c0_59] : memref<1x6x8x16xbf16, #tpu.memory_space<vmem>>, vector<1x6x8x16xbf16>
    tpu.vector_store %arg6[%c0_56, %c0_57, %c0_58, %c0_59], %72 {strides = array<i32>} : memref<1x6x8x16xbf16, #tpu.memory_space<vmem>>, vector<1x6x8x16xbf16>,
    return
  }
  func.func @transform_0(%arg0: i32) -> (i32, i32, i32, i32) {
    %c0_i32 = arith.constant 0 : i32
    %c0_i32_0 = arith.constant 0 : i32
    %c0_i32_1 = arith.constant 0 : i32
    %c0_i32_2 = arith.constant 0 : i32
    return %arg0, %c0_i32, %c0_i32_0, %c0_i32_1 : i32, i32, i32, i32
  }
  func.func @transform_1(%arg0: i32) -> (i32, i32, i32, i32) {
    %c1_i32 = arith.constant 1 : i32
    %0 = arith.muli %arg0, %c1_i32 : i32
    %c1_i32_0 = arith.constant 1 : i32
    %1 = arith.addi %0, %c1_i32_0 : i32
    %c0_i32 = arith.constant 0 : i32
    %2 = arith.addi %1, %c0_i32 : i32
    %c0_i32_1 = arith.constant 0 : i32
    %c0_i32_2 = arith.constant 0 : i32
    %c0_i32_3 = arith.constant 0 : i32
    %c0_i32_4 = arith.constant 0 : i32
    return %2, %c0_i32_1, %c0_i32_2, %c0_i32_3 : i32, i32, i32, i32
  }
  func.func @transform_2(%arg0: i32) -> (i32, i32, i32, i32) {
    %c1_i32 = arith.constant 1 : i32
    %0 = arith.muli %arg0, %c1_i32 : i32
    %c1_i32_0 = arith.constant 1 : i32
    %1 = arith.addi %0, %c1_i32_0 : i32
    %c1_i32_1 = arith.constant 1 : i32
    %2 = arith.addi %1, %c1_i32_1 : i32
    %c0_i32 = arith.constant 0 : i32
    %c0_i32_2 = arith.constant 0 : i32
    %c0_i32_3 = arith.constant 0 : i32
    %c0_i32_4 = arith.constant 0 : i32
    return %2, %c0_i32, %c0_i32_2, %c0_i32_3 : i32, i32, i32, i32
  }
  func.func @transform_3(%arg0: i32) -> (i32, i32, i32, i32) {
    %c0_i32 = arith.constant 0 : i32
    %c0_i32_0 = arith.constant 0 : i32
    %c0_i32_1 = arith.constant 0 : i32
    %c0_i32_2 = arith.constant 0 : i32
    %c0_i32_3 = arith.constant 0 : i32
    return %c0_i32, %c0_i32_0, %c0_i32_1, %c0_i32_2 : i32, i32, i32, i32
  }
  func.func @transform_4(%arg0: i32) -> (i32, i32) {
    %c0_i32 = arith.constant 0 : i32
    %c0_i32_0 = arith.constant 0 : i32
    %c0_i32_1 = arith.constant 0 : i32
    return %c0_i32, %c0_i32_0 : i32, i32
  }
  func.func @transform_5(%arg0: i32) -> (i32, i32, i32, i32) {
    %c0_i32 = arith.constant 0 : i32
    %c0_i32_0 = arith.constant 0 : i32
    %c0_i32_1 = arith.constant 0 : i32
    %c0_i32_2 = arith.constant 0 : i32
    return %arg0, %c0_i32, %c0_i32_0, %c0_i32_1 : i32, i32, i32, i32
  }
}

</mosaic_0001>

<llo_original>
// kernel: tpu_custom_call.1
$region0: #{tpu_custom_call.1}
  #allocation0 [shape = 'u32[]', space=smem, size = 0x4, offset = 0x4, fixed_abs, tag = 'smem constant byte address 0x4 - core index']
  #allocation1 [shape = 'u32[144,128]{1,0:T(1,128)}', space=vmem, size = 0x12000, scoped, tag = 'internal scratch']
  %s0 = inlined_call_operand.vmem [shape: bf16[6,8,10,4], index: 0, kind: input, shape index: {}]
  %s1 = inlined_call_operand.vmem [shape: bf16[6,8,10,4], index: 1, kind: input, shape index: {}]
  %s2 = inlined_call_operand.vmem [shape: bf16[6,8,10,4], index: 2, kind: input, shape index: {}]
  %s3 = inlined_call_operand.vmem [shape: bf16[3,3,12,16], index: 3, kind: input, shape index: {}]
  %s4 = inlined_call_operand.vmem [shape: f32[1,16], index: 4, kind: input, shape index: {}]
  %s5 = inlined_call_operand.hbm [shape: bf16[4,6,8,16], index: 5, kind: output, shape index: {}]
  %s6 = sld [smem:[#allocation0]]
  $region53: #{tpu_custom_call.1} parent=0
    _
  %s8 = ssub.s32 1, %s6
  %s9 = scalar_select 0, %s8, %s6
  $region1: #{tpu_custom_call.1} parent=0
    #allocation2 [shape = 'u8[24576]{0}', space=vmem, size = 0x6000, scoped, tag = 'output window, operand 0']
    #allocation3 [shape = 's32[2]{0}', space=sflag, size = 0x8, scoped, tag = 'scoped memory for tpu_custom_call.1']
    %10 = vsyncpa [#allocation3], 0
    %s11 = scalar_lea.sflag [#allocation3], 1
    %12 = vsyncpa %s11, 0
    loop: start=0, step=1, limit=6
    $region2: #{tpu_custom_call.1} parent=1 // loop_pre_header
      _
    $region3: #{tpu_custom_call.1} parent=1 // loop_header
      %s14 = sphi 0, %s18
      %p15 = scmp.ge.s32.totalorder %s14, 6
      %s24 = sphi 0, %s26
      %s27 = sphi 0, %s24
      %s28 = sphi 0, %s27
      %s44 = sphi 0, %s28
      %s52 = sphi 0, %s54
      %s55 = sphi 0, %s52
      %s56 = sphi 0, %s55
      %s72 = sphi 0, %s56
      %s80 = sphi 0, %s82
      %s83 = sphi 0, %s80
      %s84 = sphi 0, %s83
      %s100 = sphi 0, %s84
      %s104 = sphi 0, %s104
      %s106 = sphi 0, %s104
      %s107 = sphi 0, %s106
      %s121 = sphi 0, %s107
      %s125 = sphi 0, %s125
      %s127 = sphi 0, %s125
      %s128 = sphi 0, %s127
      %s142 = sphi 0, %s128
      %s148 = sphi 0, %s150
      %s151 = sphi 0, %s148
      %s152 = sphi 0, %s151
      %s168 = sphi 0, %s152
    $region4: #{tpu_custom_call.1} parent=1 // loop_header_branch
      %17 = sbr.rel (%p15) target = $region8
    $region5: #{tpu_custom_call.1} parent=1 // loop_body
      %s19 = ssub.s32 %s14, 1
      %s20 = ssub.s32 %s14, 2
      %s21 = sadd.s32 %s14, 1
      %s22 = ssub.s32 %s14, %s21
      %p23 = scmp.eq.s32.totalorder %s22, 0
      %s25 = sadd.s32 %s24, 1
      %s26 = scalar_select %p23, %s24, %s25
      %p29 = pneg %p23
      %p30 = scmp.eq.s32.totalorder %s14, 3
      %p31 = por %p29, %p30
      %p32 = scmp.ne.s32.totalorder %s24, %s27
      %p33 = scmp.eq.s32.totalorder %s14, 0
      %p34 = por %p32, %p33
      %p35 = scmp.ne.s32.totalorder %s24, %s27
      %p36 = scmp.eq.s32.totalorder %s19, 3
      %p37 = por %p35, %p36
      %p38 = scmp.ne.s32.totalorder %s27, %s28
      %p39 = scmp.eq.s32.totalorder %s19, 0
      %p40 = por %p38, %p39
      %p41 = scmp.ne.s32.totalorder %s27, %s28
      %p42 = scmp.eq.s32.totalorder %s20, 3
      %p43 = por %p41, %p42
      %p45 = scmp.ne.s32.totalorder %s28, %s44
      %p46 = scmp.eq.s32.totalorder %s20, 0
      %p47 = por %p45, %p46
      %s48 = sadd.s32 %s14, 1
      %s49 = sadd.s32 %s21, 1
      %s50 = ssub.s32 %s48, %s49
      %p51 = scmp.eq.s32.totalorder %s50, 0
      %s53 = sadd.s32 %s52, 1
      %s54 = scalar_select %p51, %s52, %s53
      %p57 = pneg %p51
      %p58 = scmp.eq.s32.totalorder %s14, 3
      %p59 = por %p57, %p58
      %p60 = scmp.ne.s32.totalorder %s52, %s55
      %p61 = scmp.eq.s32.totalorder %s14, 0
      %p62 = por %p60, %p61
      %p63 = scmp.ne.s32.totalorder %s52, %s55
      %p64 = scmp.eq.s32.totalorder %s19, 3
      %p65 = por %p63, %p64
      %p66 = scmp.ne.s32.totalorder %s55, %s56
      %p67 = scmp.eq.s32.totalorder %s19, 0
      %p68 = por %p66, %p67
      %p69 = scmp.ne.s32.totalorder %s55, %s56
      %p70 = scmp.eq.s32.totalorder %s20, 3
      %p71 = por %p69, %p70
      %p73 = scmp.ne.s32.totalorder %s56, %s72
      %p74 = scmp.eq.s32.totalorder %s20, 0
      %p75 = por %p73, %p74
      %s76 = sadd.s32 %s14, 2
      %s77 = sadd.s32 %s21, 2
      %s78 = ssub.s32 %s76, %s77
      %p79 = scmp.eq.s32.totalorder %s78, 0
      %s81 = sadd.s32 %s80, 1
      %s82 = scalar_select %p79, %s80, %s81
      %p85 = pneg %p79
      %p86 = scmp.eq.s32.totalorder %s14, 3
      %p87 = por %p85, %p86
      %p88 = scmp.ne.s32.totalorder %s80, %s83
      %p89 = scmp.eq.s32.totalorder %s14, 0
      %p90 = por %p88, %p89
      %p91 = scmp.ne.s32.totalorder %s80, %s83
      %p92 = scmp.eq.s32.totalorder %s19, 3
      %p93 = por %p91, %p92
      %p94 = scmp.ne.s32.totalorder %s83, %s84
      %p95 = scmp.eq.s32.totalorder %s19, 0
      %p96 = por %p94, %p95
      %p97 = scmp.ne.s32.totalorder %s83, %s84
      %p98 = scmp.eq.s32.totalorder %s20, 3
      %p99 = por %p97, %p98
      %p101 = scmp.ne.s32.totalorder %s84, %s100
      %p102 = scmp.eq.s32.totalorder %s20, 0
      %p103 = por %p101, %p102
      %s105 = sadd.s32 %s104, 1
      %p108 = scmp.eq.s32.totalorder %s14, 3
      %p109 = scmp.ne.s32.totalorder %s104, %s106
      %p110 = scmp.eq.s32.totalorder %s14, 0
      %p111 = por %p109, %p110
      %p112 = scmp.ne.s32.totalorder %s104, %s106
      %p113 = scmp.eq.s32.totalorder %s19, 3
      %p114 = por %p112, %p113
      %p115 = scmp.ne.s32.totalorder %s106, %s107
      %p116 = scmp.eq.s32.totalorder %s19, 0
      %p117 = por %p115, %p116
      %p118 = scmp.ne.s32.totalorder %s106, %s107
      %p119 = scmp.eq.s32.totalorder %s20, 3
      %p120 = por %p118, %p119
      %p122 = scmp.ne.s32.totalorder %s107, %s121
      %p123 = scmp.eq.s32.totalorder %s20, 0
      %p124 = por %p122, %p123
      %s126 = sadd.s32 %s125, 1
      %p129 = scmp.eq.s32.totalorder %s14, 3
      %p130 = scmp.ne.s32.totalorder %s125, %s127
      %p131 = scmp.eq.s32.totalorder %s14, 0
      %p132 = por %p130, %p131
      %p133 = scmp.ne.s32.totalorder %s125, %s127
      %p134 = scmp.eq.s32.totalorder %s19, 3
      %p135 = por %p133, %p134
      %p136 = scmp.ne.s32.totalorder %s127, %s128
      %p137 = scmp.eq.s32.totalorder %s19, 0
      %p138 = por %p136, %p137
      %p139 = scmp.ne.s32.totalorder %s127, %s128
      %p140 = scmp.eq.s32.totalorder %s20, 3
      %p141 = por %p139, %p140
      %p143 = scmp.ne.s32.totalorder %s128, %s142
      %p144 = scmp.eq.s32.totalorder %s20, 0
      %p145 = por %p143, %p144
      %s146 = ssub.s32 %s14, %s21
      %p147 = scmp.eq.s32.totalorder %s146, 0
      %s149 = sadd.s32 %s148, 1
      %s150 = scalar_select %p147, %s148, %s149
      %p153 = pneg %p147
      %p154 = scmp.eq.s32.totalorder %s14, 3
      %p155 = por %p153, %p154
      %p156 = scmp.ne.s32.totalorder %s148, %s151
      %p157 = scmp.eq.s32.totalorder %s14, 0
      %p158 = por %p156, %p157
      %p159 = scmp.ne.s32.totalorder %s148, %s151
      %p160 = scmp.eq.s32.totalorder %s19, 3
      %p161 = por %p159, %p160
      %p162 = scmp.ne.s32.totalorder %s151, %s152
      %p163 = scmp.eq.s32.totalorder %s19, 0
      %p164 = por %p162, %p163
      %p165 = scmp.ne.s32.totalorder %s151, %s152
      %p166 = scmp.eq.s32.totalorder %s20, 3
      %p167 = por %p165, %p166
      %p169 = scmp.ne.s32.totalorder %s152, %s168
      %p170 = scmp.eq.s32.totalorder %s20, 0
      %p171 = por %p169, %p170
      %p172 = scmp.le.s32.totalorder 1, %s14
      %p173 = scmp.lt.s32.totalorder %s14, 5
      %p174 = pnand %p172, %p173
      %p175 = pneg %p174
      // Predicated region
      $region9: #{tpu_custom_call.1} parent=5 // pred_check
        _
      $region10: #{tpu_custom_call.1} parent=5 // pred_check_branch
        %177 = sbr.rel (%p174) target = $region12
      $region11: #{tpu_custom_call.1} parent=5 // pred_region
        %s178 = ssub.s32 %s14, 1
        // Predicated region
        $region13: #{tpu_custom_call.1} parent=11 // pred_check
          %p179 = pneg %p117
        $region14: #{tpu_custom_call.1} parent=11 // pred_check_branch
          %181 = sbr.rel (%p179) target = $region16
        $region15: #{tpu_custom_call.1} parent=11 // pred_region
          _
        $region16: #{tpu_custom_call.1} parent=11 // pred_fallthru
          _
        // Predicated region
        $region17: #{tpu_custom_call.1} parent=11 // pred_check
          %p182 = pneg %p138
        $region18: #{tpu_custom_call.1} parent=11 // pred_check_branch
          %184 = sbr.rel (%p182) target = $region20
        $region19: #{tpu_custom_call.1} parent=11 // pred_region
          _
        $region20: #{tpu_custom_call.1} parent=11 // pred_fallthru
          _
      $region12: #{tpu_custom_call.1} parent=5 // pred_fallthru
        _
      %p185 = scmp.lt.s32.totalorder %s14, 4
      // Predicated region
      $region21: #{tpu_custom_call.1} parent=5 // pred_check
        %p186 = pneg %p185
      $region22: #{tpu_custom_call.1} parent=5 // pred_check_branch
        %188 = sbr.rel (%p186) target = $region24
      $region23: #{tpu_custom_call.1} parent=5 // pred_region
        // Predicated region
        $region25: #{tpu_custom_call.1} parent=23 // pred_check
          %p189 = pneg %p34
        $region26: #{tpu_custom_call.1} parent=23 // pred_check_branch
          %191 = sbr.rel (%p189) target = $region28
        $region27: #{tpu_custom_call.1} parent=23 // pred_region
          %p192 = scmp.lt.s32.totalorder %s14, 5
          %s193 = scalar_select %p192, %s14, 5
          %s194 = smul.addr %s193, 16
          %s195 = smul.addr %s194, 4
          %s196 = scalar_lea.vmem %s0, %s195
        $region28: #{tpu_custom_call.1} parent=23 // pred_fallthru
          _
        // Predicated region
        $region29: #{tpu_custom_call.1} parent=23 // pred_check
          %p197 = pneg %p62
        $region30: #{tpu_custom_call.1} parent=23 // pred_check_branch
          %199 = sbr.rel (%p197) target = $region32
        $region31: #{tpu_custom_call.1} parent=23 // pred_region
          %s200 = sadd.s32 %s14, 1
          %p201 = scmp.lt.s32.totalorder %s200, 5
          %s202 = scalar_select %p201, %s200, 5
          %s203 = smul.addr %s202, 16
          %s204 = smul.addr %s203, 4
          %s205 = scalar_lea.vmem %s1, %s204
          %s206 = sadd.s32 %s14, 1
        $region32: #{tpu_custom_call.1} parent=23 // pred_fallthru
          _
        // Predicated region
        $region33: #{tpu_custom_call.1} parent=23 // pred_check
          %p207 = pneg %p90
        $region34: #{tpu_custom_call.1} parent=23 // pred_check_branch
          %209 = sbr.rel (%p207) target = $region36
        $region35: #{tpu_custom_call.1} parent=23 // pred_region
          %s210 = sadd.s32 %s14, 2
          %p211 = scmp.lt.s32.totalorder %s210, 5
          %s212 = scalar_select %p211, %s210, 5
          %s213 = smul.addr %s212, 16
          %s214 = smul.addr %s213, 4
          %s215 = scalar_lea.vmem %s2, %s214
          %s216 = sadd.s32 %s14, 2
        $region36: #{tpu_custom_call.1} parent=23 // pred_fallthru
          _
      $region24: #{tpu_custom_call.1} parent=5 // pred_fallthru
        _
      %p217 = scmp.le.s32.totalorder 1, %s14
      %p218 = scmp.lt.s32.totalorder %s14, 5
      %p219 = pnand %p217, %p218
      %p220 = pneg %p219
      // Predicated region
      $region37: #{tpu_custom_call.1} parent=5 // pred_check
        _
      $region38: #{tpu_custom_call.1} parent=5 // pred_check_branch
        %222 = sbr.rel (%p219) target = $region40
      $region39: #{tpu_custom_call.1} parent=5 // pred_region
        %s223 = ssub.s32 %s14, 1
        %p224 = scmp.lt.s32.totalorder %s19, 5
        %s225 = scalar_select %p224, %s19, 5
        %s226 = smul.addr %s225, 16
        %s227 = smul.addr %s226, 4
        %s228 = scalar_lea.vmem %s0, %s227
        %p229 = pneg %p40
        %p230 = pneg %p37
        %s231 = sadd.s32 %s19, 1
        %p232 = scmp.lt.s32.totalorder %s231, 5
        %s233 = scalar_select %p232, %s231, 5
        %s234 = smul.addr %s233, 16
        %s235 = smul.addr %s234, 4
        %s236 = scalar_lea.vmem %s1, %s235
        %p237 = pneg %p68
        %p238 = pneg %p65
        %s239 = sadd.s32 %s19, 2
        %p240 = scmp.lt.s32.totalorder %s239, 5
        %s241 = scalar_select %p240, %s239, 5
        %s242 = smul.addr %s241, 16
        %s243 = smul.addr %s242, 4
        %s244 = scalar_lea.vmem %s2, %s243
        %p245 = pneg %p96
        %p246 = pneg %p93
        %p247 = pneg %p117
        %p248 = pneg %p114
        %p249 = pneg %p138
        %p250 = pneg %p135
        %p251 = pneg %p164
        %p252 = pneg %p161
        %s253 = sand.u32 %s151, 1
        %s254 = scalar_lea.sflag [#allocation3], %s253
        %s255 = sand.u32 %s151, 1
        %s256 = smul.addr %s255, 24
        %s257 = scalar_lea.vmem [#allocation2], %s256
        %p258 = scmp.lt.s32.totalorder %s19, 5
        %s259 = scalar_select %p258, %s19, 5
        %s260 = smul.addr %s259, 16
        %s261 = smul.addr %s260, 4
        %s262 = scalar_lea.vmem %s0, %s261
        %s263 = sadd.s32 %s19, 1
        %p264 = scmp.lt.s32.totalorder %s263, 5
        %s265 = scalar_select %p264, %s263, 5
        %s266 = smul.addr %s265, 16
        %s267 = smul.addr %s266, 4
        %s268 = scalar_lea.vmem %s1, %s267
        %s269 = sadd.s32 %s19, 1
        %s270 = sadd.s32 %s19, 2
        %p271 = scmp.lt.s32.totalorder %s270, 5
        %s272 = scalar_select %p271, %s270, 5
        %s273 = smul.addr %s272, 16
        %s274 = smul.addr %s273, 4
        %s275 = scalar_lea.vmem %s2, %s274
        %s276 = sadd.s32 %s19, 2
        %v278 = vld [vmem:[%s262] sm:$0xf]
        %v279 = vld [vmem:[%s262 + $0x4] sm:$0x1]
        %v280 = vld [vmem:[%s262 + $0x8] sm:$0xf]
        %v281 = vld [vmem:[%s262 + $0xc] sm:$0x1]
        %v282 = vld [vmem:[%s262 + $0x10] sm:$0xf]
        %v283 = vld [vmem:[%s262 + $0x14] sm:$0x1]
        %v284 = vld [vmem:[%s262 + $0x18] sm:$0xf]
        %v285 = vld [vmem:[%s262 + $0x1c] sm:$0x1]
        %v286 = vld [vmem:[%s262 + $0x20] sm:$0xf]
        %v287 = vld [vmem:[%s262 + $0x24] sm:$0x1]
        %v288 = vld [vmem:[%s262 + $0x28] sm:$0xf]
        %v289 = vld [vmem:[%s262 + $0x2c] sm:$0x1]
        %v290 = vld [vmem:[%s262 + $0x30] sm:$0xf]
        %v291 = vld [vmem:[%s262 + $0x34] sm:$0x1]
        %v292 = vld [vmem:[%s262 + $0x38] sm:$0xf]
        %v293 = vld [vmem:[%s262 + $0x3c] sm:$0x1]
        %v294 = vld [vmem:[%s268] sm:$0xf]
        %v295 = vld [vmem:[%s268 + $0x4] sm:$0x1]
        %v296 = vld [vmem:[%s268 + $0x8] sm:$0xf]
        %v297 = vld [vmem:[%s268 + $0xc] sm:$0x1]
        %v298 = vld [vmem:[%s268 + $0x10] sm:$0xf]
        %v299 = vld [vmem:[%s268 + $0x14] sm:$0x1]
        %v300 = vld [vmem:[%s268 + $0x18] sm:$0xf]
        %v301 = vld [vmem:[%s268 + $0x1c] sm:$0x1]
        %v302 = vld [vmem:[%s268 + $0x20] sm:$0xf]
        %v303 = vld [vmem:[%s268 + $0x24] sm:$0x1]
        %v304 = vld [vmem:[%s268 + $0x28] sm:$0xf]
        %v305 = vld [vmem:[%s268 + $0x2c] sm:$0x1]
        %v306 = vld [vmem:[%s268 + $0x30] sm:$0xf]
        %v307 = vld [vmem:[%s268 + $0x34] sm:$0x1]
        %v308 = vld [vmem:[%s268 + $0x38] sm:$0xf]
        %v309 = vld [vmem:[%s268 + $0x3c] sm:$0x1]
        %v310 = vld [vmem:[%s275] sm:$0xf]
        %v311 = vld [vmem:[%s275 + $0x4] sm:$0x1]
        %v312 = vld [vmem:[%s275 + $0x8] sm:$0xf]
        %v313 = vld [vmem:[%s275 + $0xc] sm:$0x1]
        %v314 = vld [vmem:[%s275 + $0x10] sm:$0xf]
        %v315 = vld [vmem:[%s275 + $0x14] sm:$0x1]
        %v316 = vld [vmem:[%s275 + $0x18] sm:$0xf]
        %v317 = vld [vmem:[%s275 + $0x1c] sm:$0x1]
        %v318 = vld [vmem:[%s275 + $0x20] sm:$0xf]
        %v319 = vld [vmem:[%s275 + $0x24] sm:$0x1]
        %v320 = vld [vmem:[%s275 + $0x28] sm:$0xf]
        %v321 = vld [vmem:[%s275 + $0x2c] sm:$0x1]
        %v322 = vld [vmem:[%s275 + $0x30] sm:$0xf]
        %v323 = vld [vmem:[%s275 + $0x34] sm:$0x1]
        %v324 = vld [vmem:[%s275 + $0x38] sm:$0xf]
        %v325 = vld [vmem:[%s275 + $0x3c] sm:$0x1]
        %v342 = vunpack.c.l.b16 %v278
        %v343 = vunpack.c.l.b16 %v279
        %v344 = vunpack.c.l.b16 %v280
        %v345 = vunpack.c.l.b16 %v281
        %v346 = vunpack.c.l.b16 %v282
        %v347 = vunpack.c.l.b16 %v283
        %v348 = vunpack.c.l.b16 %v284
        %v349 = vunpack.c.l.b16 %v285
        %v350 = vunpack.c.l.b16 %v286
        %v351 = vunpack.c.l.b16 %v287
        %v352 = vunpack.c.l.b16 %v288
        %v353 = vunpack.c.l.b16 %v289
        %v354 = vunpack.c.l.b16 %v290
        %v355 = vunpack.c.l.b16 %v291
        %v356 = vunpack.c.l.b16 %v292
        %v357 = vunpack.c.l.b16 %v293
        %v358 = vpack.c.b16 %v343, %v342
        %v359 = vpack.c.b16 %v345, %v344
        %v360 = vpack.c.b16 %v347, %v346
        %v361 = vpack.c.b16 %v349, %v348
        %v362 = vpack.c.b16 %v351, %v350
        %v363 = vpack.c.b16 %v353, %v352
        %v364 = vpack.c.b16 %v355, %v354
        %v365 = vpack.c.b16 %v357, %v356
        %v367 = vshrl.u32 %v358, 16
        %v369 = vshll.u32 %v358, 16
        %v371 = vrot.slane %v369, 1
        %v372 = vor.u32 %v367, %v371
        %v374 = vshrl.u32 %v359, 16
        %v376 = vshll.u32 %v359, 16
        %v378 = vrot.slane %v376, 1
        %v379 = vor.u32 %v374, %v378
        %v381 = vshrl.u32 %v360, 16
        %v383 = vshll.u32 %v360, 16
        %v385 = vrot.slane %v383, 1
        %v386 = vor.u32 %v381, %v385
        %v388 = vshrl.u32 %v361, 16
        %v390 = vshll.u32 %v361, 16
        %v392 = vrot.slane %v390, 1
        %v393 = vor.u32 %v388, %v392
        %v395 = vshrl.u32 %v362, 16
        %v397 = vshll.u32 %v362, 16
        %v399 = vrot.slane %v397, 1
        %v400 = vor.u32 %v395, %v399
        %v402 = vshrl.u32 %v363, 16
        %v404 = vshll.u32 %v363, 16
        %v406 = vrot.slane %v404, 1
        %v407 = vor.u32 %v402, %v406
        %v409 = vshrl.u32 %v364, 16
        %v411 = vshll.u32 %v364, 16
        %v413 = vrot.slane %v411, 1
        %v414 = vor.u32 %v409, %v413
        %v416 = vshrl.u32 %v365, 16
        %v418 = vshll.u32 %v365, 16
        %v420 = vrot.slane %v418, 1
        %v421 = vor.u32 %v416, %v420
        %422 = vrot.lane.b32.xlu0 %v372, 4
        %v423 = vpop.permute.xlu0 %422
        %424 = vrot.lane.b32.xlu0 %v379, 4
        %v425 = vpop.permute.xlu0 %424
        %426 = vrot.lane.b32.xlu0 %v386, 4
        %v427 = vpop.permute.xlu0 %426
        %428 = vrot.lane.b32.xlu0 %v393, 4
        %v429 = vpop.permute.xlu0 %428
        %430 = vrot.lane.b32.xlu0 %v400, 4
        %v431 = vpop.permute.xlu0 %430
        %432 = vrot.lane.b32.xlu0 %v407, 4
        %v433 = vpop.permute.xlu0 %432
        %434 = vrot.lane.b32.xlu0 %v414, 4
        %v435 = vpop.permute.xlu0 %434
        %436 = vrot.lane.b32.xlu0 %v421, 4
        %v437 = vpop.permute.xlu0 %436
        %v438 = vrot.slane %v358, 1
        %v439 = vrot.slane %v359, 1
        %v440 = vrot.slane %v360, 1
        %v441 = vrot.slane %v361, 1
        %v442 = vrot.slane %v362, 1
        %v443 = vrot.slane %v363, 1
        %v444 = vrot.slane %v364, 1
        %v445 = vrot.slane %v365, 1
        %446 = vrot.lane.b32.xlu0 %v438, 8
        %v447 = vpop.permute.xlu0 %446
        %448 = vrot.lane.b32.xlu0 %v439, 8
        %v449 = vpop.permute.xlu0 %448
        %450 = vrot.lane.b32.xlu0 %v440, 8
        %v451 = vpop.permute.xlu0 %450
        %452 = vrot.lane.b32.xlu0 %v441, 8
        %v453 = vpop.permute.xlu0 %452
        %454 = vrot.lane.b32.xlu0 %v442, 8
        %v455 = vpop.permute.xlu0 %454
        %456 = vrot.lane.b32.xlu0 %v443, 8
        %v457 = vpop.permute.xlu0 %456
        %458 = vrot.lane.b32.xlu0 %v444, 8
        %v459 = vpop.permute.xlu0 %458
        %460 = vrot.lane.b32.xlu0 %v445, 8
        %v461 = vpop.permute.xlu0 %460
        %vm462 = vcmask 31744
        %v465 = vsel %vm462, %v278, %v423
        %v468 = vsel %vm462, %v280, %v425
        %v471 = vsel %vm462, %v282, %v427
        %v474 = vsel %vm462, %v284, %v429
        %v477 = vsel %vm462, %v286, %v431
        %v480 = vsel %vm462, %v288, %v433
        %v483 = vsel %vm462, %v290, %v435
        %v486 = vsel %vm462, %v292, %v437
        %vm487 = vcmask 64512
        %v489 = vsel %vm487, %v465, %v447
        %v491 = vsel %vm487, %v468, %v449
        %v493 = vsel %vm487, %v471, %v451
        %v495 = vsel %vm487, %v474, %v453
        %v497 = vsel %vm487, %v477, %v455
        %v499 = vsel %vm487, %v480, %v457
        %v501 = vsel %vm487, %v483, %v459
        %v503 = vsel %vm487, %v486, %v461
        %v520 = vunpack.c.l.b16 %v294
        %v521 = vunpack.c.l.b16 %v295
        %v522 = vunpack.c.l.b16 %v296
        %v523 = vunpack.c.l.b16 %v297
        %v524 = vunpack.c.l.b16 %v298
        %v525 = vunpack.c.l.b16 %v299
        %v526 = vunpack.c.l.b16 %v300
        %v527 = vunpack.c.l.b16 %v301
        %v528 = vunpack.c.l.b16 %v302
        %v529 = vunpack.c.l.b16 %v303
        %v530 = vunpack.c.l.b16 %v304
        %v531 = vunpack.c.l.b16 %v305
        %v532 = vunpack.c.l.b16 %v306
        %v533 = vunpack.c.l.b16 %v307
        %v534 = vunpack.c.l.b16 %v308
        %v535 = vunpack.c.l.b16 %v309
        %v536 = vpack.c.b16 %v521, %v520
        %v537 = vpack.c.b16 %v523, %v522
        %v538 = vpack.c.b16 %v525, %v524
        %v539 = vpack.c.b16 %v527, %v526
        %v540 = vpack.c.b16 %v529, %v528
        %v541 = vpack.c.b16 %v531, %v530
        %v542 = vpack.c.b16 %v533, %v532
        %v543 = vpack.c.b16 %v535, %v534
        %v545 = vshrl.u32 %v536, 16
        %v547 = vshll.u32 %v536, 16
        %v549 = vrot.slane %v547, 1
        %v550 = vor.u32 %v545, %v549
        %v552 = vshrl.u32 %v537, 16
        %v554 = vshll.u32 %v537, 16
        %v556 = vrot.slane %v554, 1
        %v557 = vor.u32 %v552, %v556
        %v559 = vshrl.u32 %v538, 16
        %v561 = vshll.u32 %v538, 16
        %v563 = vrot.slane %v561, 1
        %v564 = vor.u32 %v559, %v563
        %v566 = vshrl.u32 %v539, 16
        %v568 = vshll.u32 %v539, 16
        %v570 = vrot.slane %v568, 1
        %v571 = vor.u32 %v566, %v570
        %v573 = vshrl.u32 %v540, 16
        %v575 = vshll.u32 %v540, 16
        %v577 = vrot.slane %v575, 1
        %v578 = vor.u32 %v573, %v577
        %v580 = vshrl.u32 %v541, 16
        %v582 = vshll.u32 %v541, 16
        %v584 = vrot.slane %v582, 1
        %v585 = vor.u32 %v580, %v584
        %v587 = vshrl.u32 %v542, 16
        %v589 = vshll.u32 %v542, 16
        %v591 = vrot.slane %v589, 1
        %v592 = vor.u32 %v587, %v591
        %v594 = vshrl.u32 %v543, 16
        %v596 = vshll.u32 %v543, 16
        %v598 = vrot.slane %v596, 1
        %v599 = vor.u32 %v594, %v598
        %600 = vrot.lane.b32.xlu0 %v550, 4
        %v601 = vpop.permute.xlu0 %600
        %602 = vrot.lane.b32.xlu0 %v557, 4
        %v603 = vpop.permute.xlu0 %602
        %604 = vrot.lane.b32.xlu0 %v564, 4
        %v605 = vpop.permute.xlu0 %604
        %606 = vrot.lane.b32.xlu0 %v571, 4
        %v607 = vpop.permute.xlu0 %606
        %608 = vrot.lane.b32.xlu0 %v578, 4
        %v609 = vpop.permute.xlu0 %608
        %610 = vrot.lane.b32.xlu0 %v585, 4
        %v611 = vpop.permute.xlu0 %610
        %612 = vrot.lane.b32.xlu0 %v592, 4
        %v613 = vpop.permute.xlu0 %612
        %614 = vrot.lane.b32.xlu0 %v599, 4
        %v615 = vpop.permute.xlu0 %614
        %v616 = vrot.slane %v536, 1
        %v617 = vrot.slane %v537, 1
        %v618 = vrot.slane %v538, 1
        %v619 = vrot.slane %v539, 1
        %v620 = vrot.slane %v540, 1
        %v621 = vrot.slane %v541, 1
        %v622 = vrot.slane %v542, 1
        %v623 = vrot.slane %v543, 1
        %624 = vrot.lane.b32.xlu0 %v616, 8
        %v625 = vpop.permute.xlu0 %624
        %626 = vrot.lane.b32.xlu0 %v617, 8
        %v627 = vpop.permute.xlu0 %626
        %628 = vrot.lane.b32.xlu0 %v618, 8
        %v629 = vpop.permute.xlu0 %628
        %630 = vrot.lane.b32.xlu0 %v619, 8
        %v631 = vpop.permute.xlu0 %630
        %632 = vrot.lane.b32.xlu0 %v620, 8
        %v633 = vpop.permute.xlu0 %632
        %634 = vrot.lane.b32.xlu0 %v621, 8
        %v635 = vpop.permute.xlu0 %634
        %636 = vrot.lane.b32.xlu0 %v622, 8
        %v637 = vpop.permute.xlu0 %636
        %638 = vrot.lane.b32.xlu0 %v623, 8
        %v639 = vpop.permute.xlu0 %638
        %v642 = vsel %vm462, %v294, %v601
        %v645 = vsel %vm462, %v296, %v603
        %v648 = vsel %vm462, %v298, %v605
        %v651 = vsel %vm462, %v300, %v607
        %v654 = vsel %vm462, %v302, %v609
        %v657 = vsel %vm462, %v304, %v611
        %v660 = vsel %vm462, %v306, %v613
        %v663 = vsel %vm462, %v308, %v615
        %v665 = vsel %vm487, %v642, %v625
        %v667 = vsel %vm487, %v645, %v627
        %v669 = vsel %vm487, %v648, %v629
        %v671 = vsel %vm487, %v651, %v631
        %v673 = vsel %vm487, %v654, %v633
        %v675 = vsel %vm487, %v657, %v635
        %v677 = vsel %vm487, %v660, %v637
        %v679 = vsel %vm487, %v663, %v639
        %v696 = vunpack.c.l.b16 %v310
        %v697 = vunpack.c.l.b16 %v311
        %v698 = vunpack.c.l.b16 %v312
        %v699 = vunpack.c.l.b16 %v313
        %v700 = vunpack.c.l.b16 %v314
        %v701 = vunpack.c.l.b16 %v315
        %v702 = vunpack.c.l.b16 %v316
        %v703 = vunpack.c.l.b16 %v317
        %v704 = vunpack.c.l.b16 %v318
        %v705 = vunpack.c.l.b16 %v319
        %v706 = vunpack.c.l.b16 %v320
        %v707 = vunpack.c.l.b16 %v321
        %v708 = vunpack.c.l.b16 %v322
        %v709 = vunpack.c.l.b16 %v323
        %v710 = vunpack.c.l.b16 %v324
        %v711 = vunpack.c.l.b16 %v325
        %v712 = vpack.c.b16 %v697, %v696
        %v713 = vpack.c.b16 %v699, %v698
        %v714 = vpack.c.b16 %v701, %v700
        %v715 = vpack.c.b16 %v703, %v702
        %v716 = vpack.c.b16 %v705, %v704
        %v717 = vpack.c.b16 %v707, %v706
        %v718 = vpack.c.b16 %v709, %v708
        %v719 = vpack.c.b16 %v711, %v710
        %v721 = vshrl.u32 %v712, 16
        %v723 = vshll.u32 %v712, 16
        %v725 = vrot.slane %v723, 1
        %v726 = vor.u32 %v721, %v725
        %v728 = vshrl.u32 %v713, 16
        %v730 = vshll.u32 %v713, 16
        %v732 = vrot.slane %v730, 1
        %v733 = vor.u32 %v728, %v732
        %v735 = vshrl.u32 %v714, 16
        %v737 = vshll.u32 %v714, 16
        %v739 = vrot.slane %v737, 1
        %v740 = vor.u32 %v735, %v739
        %v742 = vshrl.u32 %v715, 16
        %v744 = vshll.u32 %v715, 16
        %v746 = vrot.slane %v744, 1
        %v747 = vor.u32 %v742, %v746
        %v749 = vshrl.u32 %v716, 16
        %v751 = vshll.u32 %v716, 16
        %v753 = vrot.slane %v751, 1
        %v754 = vor.u32 %v749, %v753
        %v756 = vshrl.u32 %v717, 16
        %v758 = vshll.u32 %v717, 16
        %v760 = vrot.slane %v758, 1
        %v761 = vor.u32 %v756, %v760
        %v763 = vshrl.u32 %v718, 16
        %v765 = vshll.u32 %v718, 16
        %v767 = vrot.slane %v765, 1
        %v768 = vor.u32 %v763, %v767
        %v770 = vshrl.u32 %v719, 16
        %v772 = vshll.u32 %v719, 16
        %v774 = vrot.slane %v772, 1
        %v775 = vor.u32 %v770, %v774
        %776 = vrot.lane.b32.xlu0 %v726, 4
        %v777 = vpop.permute.xlu0 %776
        %778 = vrot.lane.b32.xlu0 %v733, 4
        %v779 = vpop.permute.xlu0 %778
        %780 = vrot.lane.b32.xlu0 %v740, 4
        %v781 = vpop.permute.xlu0 %780
        %782 = vrot.lane.b32.xlu0 %v747, 4
        %v783 = vpop.permute.xlu0 %782
        %784 = vrot.lane.b32.xlu0 %v754, 4
        %v785 = vpop.permute.xlu0 %784
        %786 = vrot.lane.b32.xlu0 %v761, 4
        %v787 = vpop.permute.xlu0 %786
        %788 = vrot.lane.b32.xlu0 %v768, 4
        %v789 = vpop.permute.xlu0 %788
        %790 = vrot.lane.b32.xlu0 %v775, 4
        %v791 = vpop.permute.xlu0 %790
        %v792 = vrot.slane %v712, 1
        %v793 = vrot.slane %v713, 1
        %v794 = vrot.slane %v714, 1
        %v795 = vrot.slane %v715, 1
        %v796 = vrot.slane %v716, 1
        %v797 = vrot.slane %v717, 1
        %v798 = vrot.slane %v718, 1
        %v799 = vrot.slane %v719, 1
        %800 = vrot.lane.b32.xlu0 %v792, 8
        %v801 = vpop.permute.xlu0 %800
        %802 = vrot.lane.b32.xlu0 %v793, 8
        %v803 = vpop.permute.xlu0 %802
        %804 = vrot.lane.b32.xlu0 %v794, 8
        %v805 = vpop.permute.xlu0 %804
        %806 = vrot.lane.b32.xlu0 %v795, 8
        %v807 = vpop.permute.xlu0 %806
        %808 = vrot.lane.b32.xlu0 %v796, 8
        %v809 = vpop.permute.xlu0 %808
        %810 = vrot.lane.b32.xlu0 %v797, 8
        %v811 = vpop.permute.xlu0 %810
        %812 = vrot.lane.b32.xlu0 %v798, 8
        %v813 = vpop.permute.xlu0 %812
        %814 = vrot.lane.b32.xlu0 %v799, 8
        %v815 = vpop.permute.xlu0 %814
        %v818 = vsel %vm462, %v310, %v777
        %v821 = vsel %vm462, %v312, %v779
        %v824 = vsel %vm462, %v314, %v781
        %v827 = vsel %vm462, %v316, %v783
        %v830 = vsel %vm462, %v318, %v785
        %v833 = vsel %vm462, %v320, %v787
        %v836 = vsel %vm462, %v322, %v789
        %v839 = vsel %vm462, %v324, %v791
        %v841 = vsel %vm487, %v818, %v801
        %v843 = vsel %vm487, %v821, %v803
        %v845 = vsel %vm487, %v824, %v805
        %v847 = vsel %vm487, %v827, %v807
        %v849 = vsel %vm487, %v830, %v809
        %v851 = vsel %vm487, %v833, %v811
        %v853 = vsel %vm487, %v836, %v813
        %v855 = vsel %vm487, %v839, %v815
        %v856 = vld [vmem:[%s4] sm:$0x1]
        %v857 = vld [vmem:[%s3] sm:$0xf]
        %v858 = vld [vmem:[%s3 + $0x4] sm:$0x3]
        %s859 = scalar_lea.vmem %s3, 8
        %v860 = vld [vmem:[%s859] sm:$0xf]
        %v861 = vld [vmem:[%s859 + $0x4] sm:$0x3]
        %v868 = vunpack.c.l.b16 %v491
        %v869 = vunpack.c.l.b16 %v493
        %v870 = vunpack.c.l.b16 %v495
        %v871 = vunpack.c.l.b16 %v497
        %v872 = vunpack.c.l.b16 %v499
        %v873 = vunpack.c.l.b16 %v501
        %v874 = vpack.c.b16 %v869, %v868
        %v875 = vpack.c.b16 %v871, %v870
        %v876 = vpack.c.b16 %v873, %v872
        %v879 = vunpack.c.l.b16 %v860
        %v880 = vunpack.c.l.b16 %v861
        %v881 = vpack.c.b16 %v880, %v879
        %vm882 = vcmask 97280
        %v884 = vsel %vm882, %v874, 0
        %v887 = vsel %vm882, %v875, 0
        %v890 = vsel %vm882, %v876, 0
        %vm892 = vcmask 1045504
        %v894 = vsel %vm892, %v881, 0
        %896 = vmatprep.subr.bf16.mxu0 0
        %897 = vmatpush1.bf16.msra.mxu0 %v894
        %898 = vmatprep.subr.bf16.mxu0 0
        %899 = vmatpush1.bf16.msra.mxu0 0
        %900 = vmatprep.subr.bf16.mxu0 0
        %901 = vmatpush1.bf16.msra.mxu0 0
        %902 = vmatprep.subr.bf16.mxu0 0
        %903 = vmatpush1.bf16.msra.mxu0 0
        %904 = vmatprep.subr.bf16.mxu0 0
        %905 = vmatpush1.bf16.msra.mxu0 0
        %906 = vmatprep.subr.bf16.mxu0 0
        %907 = vmatpush1.bf16.msra.mxu0 0
        %908 = vmatprep.subr.bf16.mxu0 0
        %909 = vmatpush1.bf16.msra.mxu0 0
        %910 = vmatprep.subr.bf16.mxu0 0
        %911 = vmatpush1.bf16.msra.mxu0 0
        %912 = vmatprep.subr.bf16.mxu0 0
        %913 = vmatpush1.bf16.msra.mxu0 0
        %914 = vmatprep.subr.bf16.mxu0 0
        %915 = vmatpush1.bf16.msra.mxu0 0
        %916 = vmatprep.subr.bf16.mxu0 0
        %917 = vmatpush1.bf16.msra.mxu0 0
        %918 = vmatprep.subr.bf16.mxu0 0
        %919 = vmatpush1.bf16.msra.mxu0 0
        %920 = vmatprep.subr.bf16.mxu0 0
        %921 = vmatpush1.bf16.msra.mxu0 0
        %922 = vmatprep.subr.bf16.mxu0 0
        %923 = vmatpush1.bf16.msra.mxu0 0
        %924 = vmatprep.subr.bf16.mxu0 0
        %925 = vmatpush1.bf16.msra.mxu0 0
        %926 = vmatprep.subr.bf16.mxu0 0
        %927 = vmatpush1.bf16.msra.mxu0 0
        %928 = vmatprep.mubr.bf16.mxu0 0
        %929 = vmatmul.mubr.bf16.gmra.mrb[0].mxu0 %v884
        %v930 = vpop.f32.mrb[0].mxu0
        %v931 = vadd.f32 0.0, %v930
        %v932 = vpop.f32.mrb[0].mxu0
        %v933 = vpop.f32.mrb[0].mxu0
        %v934 = vadd.f32 0.0, %v933
        %v935 = vpop.f32.mrb[0].mxu0
        %936 = vmatprep.mubr.bf16.mxu0 0
        %937 = vmatmul.mubr.bf16.gmra.mrb[0].mxu0 %v887
        %v938 = vpop.f32.mrb[0].mxu0
        %v939 = vadd.f32 0.0, %v938
        %v940 = vpop.f32.mrb[0].mxu0
        %v941 = vpop.f32.mrb[0].mxu0
        %v942 = vadd.f32 0.0, %v941
        %v943 = vpop.f32.mrb[0].mxu0
        %944 = vmatprep.mubr.bf16.mxu0 0
        %945 = vmatmul.mubr.bf16.gmra.mrb[0].mxu0 %v890
        %v946 = vpop.f32.mrb[0].mxu0
        %v947 = vadd.f32 0.0, %v946
        %v948 = vpop.f32.mrb[0].mxu0
        %v949 = vpop.f32.mrb[0].mxu0
        %v950 = vadd.f32 0.0, %v949
        %v951 = vpop.f32.mrb[0].mxu0
        %952 = vdwg.mxu0
        %v954 = vunpack.c.l.b16 %v489
        %v955 = vpack.c.b16 %v868, %v954
        %v956 = vpack.c.b16 %v870, %v869
        %v957 = vpack.c.b16 %v872, %v871
        %v960 = vunpack.c.l.b16 %v857
        %v961 = vunpack.c.l.b16 %v858
        %v962 = vpack.c.b16 %v961, %v960
        %v964 = vsel %vm882, %v955, 0
        %v967 = vsel %vm882, %v956, 0
        %v970 = vsel %vm882, %v957, 0
        %v973 = vsel %vm892, %v962, 0
        %975 = vmatprep.subr.bf16.mxu0 0
        %976 = vmatpush1.bf16.msra.mxu0 %v973
        %977 = vmatprep.subr.bf16.mxu0 0
        %978 = vmatpush1.bf16.msra.mxu0 0
        %979 = vmatprep.subr.bf16.mxu0 0
        %980 = vmatpush1.bf16.msra.mxu0 0
        %981 = vmatprep.subr.bf16.mxu0 0
        %982 = vmatpush1.bf16.msra.mxu0 0
        %983 = vmatprep.subr.bf16.mxu0 0
        %984 = vmatpush1.bf16.msra.mxu0 0
        %985 = vmatprep.subr.bf16.mxu0 0
        %986 = vmatpush1.bf16.msra.mxu0 0
        %987 = vmatprep.subr.bf16.mxu0 0
        %988 = vmatpush1.bf16.msra.mxu0 0
        %989 = vmatprep.subr.bf16.mxu0 0
        %990 = vmatpush1.bf16.msra.mxu0 0
        %991 = vmatprep.subr.bf16.mxu0 0
        %992 = vmatpush1.bf16.msra.mxu0 0
        %993 = vmatprep.subr.bf16.mxu0 0
        %994 = vmatpush1.bf16.msra.mxu0 0
        %995 = vmatprep.subr.bf16.mxu0 0
        %996 = vmatpush1.bf16.msra.mxu0 0
        %997 = vmatprep.subr.bf16.mxu0 0
        %998 = vmatpush1.bf16.msra.mxu0 0
        %999 = vmatprep.subr.bf16.mxu0 0
        %1000 = vmatpush1.bf16.msra.mxu0 0
        %1001 = vmatprep.subr.bf16.mxu0 0
        %1002 = vmatpush1.bf16.msra.mxu0 0
        %1003 = vmatprep.subr.bf16.mxu0 0
        %1004 = vmatpush1.bf16.msra.mxu0 0
        %1005 = vmatprep.subr.bf16.mxu0 0
        %1006 = vmatpush1.bf16.msra.mxu0 0
        %1007 = vmatprep.mubr.bf16.mxu0 0
        %1008 = vmatmul.mubr.bf16.gmra.mrb[0].mxu0 %v964
        %v1009 = vpop.f32.mrb[0].mxu0
        %v1010 = vadd.f32 %v931, %v1009
        %v1011 = vpop.f32.mrb[0].mxu0
        %v1012 = vpop.f32.mrb[0].mxu0
        %v1013 = vadd.f32 %v934, %v1012
        %v1014 = vpop.f32.mrb[0].mxu0
        %1015 = vmatprep.mubr.bf16.mxu0 0
        %1016 = vmatmul.mubr.bf16.gmra.mrb[0].mxu0 %v967
        %v1017 = vpop.f32.mrb[0].mxu0
        %v1018 = vadd.f32 %v939, %v1017
        %v1019 = vpop.f32.mrb[0].mxu0
        %v1020 = vpop.f32.mrb[0].mxu0
        %v1021 = vadd.f32 %v942, %v1020
        %v1022 = vpop.f32.mrb[0].mxu0
        %1023 = vmatprep.mubr.bf16.mxu0 0
        %1024 = vmatmul.mubr.bf16.gmra.mrb[0].mxu0 %v970
        %v1025 = vpop.f32.mrb[0].mxu0
        %v1026 = vadd.f32 %v947, %v1025
        %v1027 = vpop.f32.mrb[0].mxu0
        %v1028 = vpop.f32.mrb[0].mxu0
        %v1029 = vadd.f32 %v950, %v1028
        %v1030 = vpop.f32.mrb[0].mxu0
        %1031 = vdwg.mxu0
        %s1032 = scalar_lea.vmem %s3, 16
        %v1033 = vld [vmem:[%s1032] sm:$0xf]
        %v1034 = vld [vmem:[%s1032 + $0x4] sm:$0x3]
        %v1036 = vunpack.c.l.b16 %v503
        %v1037 = vpack.c.b16 %v1036, %v873
        %v1040 = vunpack.c.l.b16 %v1033
        %v1041 = vunpack.c.l.b16 %v1034
        %v1042 = vpack.c.b16 %v1041, %v1040
        %v1044 = vsel %vm882, %v1037, 0
        %v1047 = vsel %vm892, %v1042, 0
        %1049 = vmatprep.subr.bf16.mxu0 0
        %1050 = vmatpush1.bf16.msra.mxu0 %v1047
        %1051 = vmatprep.subr.bf16.mxu0 0
        %1052 = vmatpush1.bf16.msra.mxu0 0
        %1053 = vmatprep.subr.bf16.mxu0 0
        %1054 = vmatpush1.bf16.msra.mxu0 0
        %1055 = vmatprep.subr.bf16.mxu0 0
        %1056 = vmatpush1.bf16.msra.mxu0 0
        %1057 = vmatprep.subr.bf16.mxu0 0
        %1058 = vmatpush1.bf16.msra.mxu0 0
        %1059 = vmatprep.subr.bf16.mxu0 0
        %1060 = vmatpush1.bf16.msra.mxu0 0
        %1061 = vmatprep.subr.bf16.mxu0 0
        %1062 = vmatpush1.bf16.msra.mxu0 0
        %1063 = vmatprep.subr.bf16.mxu0 0
        %1064 = vmatpush1.bf16.msra.mxu0 0
        %1065 = vmatprep.subr.bf16.mxu0 0
        %1066 = vmatpush1.bf16.msra.mxu0 0
        %1067 = vmatprep.subr.bf16.mxu0 0
        %1068 = vmatpush1.bf16.msra.mxu0 0
        %1069 = vmatprep.subr.bf16.mxu0 0
        %1070 = vmatpush1.bf16.msra.mxu0 0
        %1071 = vmatprep.subr.bf16.mxu0 0
        %1072 = vmatpush1.bf16.msra.mxu0 0
        %1073 = vmatprep.subr.bf16.mxu0 0
        %1074 = vmatpush1.bf16.msra.mxu0 0
        %1075 = vmatprep.subr.bf16.mxu0 0
        %1076 = vmatpush1.bf16.msra.mxu0 0
        %1077 = vmatprep.subr.bf16.mxu0 0
        %1078 = vmatpush1.bf16.msra.mxu0 0
        %1079 = vmatprep.subr.bf16.mxu0 0
        %1080 = vmatpush1.bf16.msra.mxu0 0
        %1081 = vmatprep.mubr.bf16.mxu0 0
        %1082 = vmatmul.mubr.bf16.gmra.mrb[0].mxu0 %v967
        %v1083 = vpop.f32.mrb[0].mxu0
        %v1084 = vadd.f32 0.0, %v1083
        %v1085 = vpop.f32.mrb[0].mxu0
        %v1086 = vpop.f32.mrb[0].mxu0
        %v1087 = vadd.f32 0.0, %v1086
        %v1088 = vpop.f32.mrb[0].mxu0
        %1089 = vmatprep.mubr.bf16.mxu0 0
        %1090 = vmatmul.mubr.bf16.gmra.mrb[0].mxu0 %v970
        %v1091 = vpop.f32.mrb[0].mxu0
        %v1092 = vadd.f32 0.0, %v1091
        %v1093 = vpop.f32.mrb[0].mxu0
        %v1094 = vpop.f32.mrb[0].mxu0
        %v1095 = vadd.f32 0.0, %v1094
        %v1096 = vpop.f32.mrb[0].mxu0
        %1097 = vmatprep.mubr.bf16.mxu0 0
        %1098 = vmatmul.mubr.bf16.gmra.mrb[0].mxu0 %v1044
        %v1099 = vpop.f32.mrb[0].mxu0
        %v1100 = vadd.f32 0.0, %v1099
        %v1101 = vpop.f32.mrb[0].mxu0
        %v1102 = vpop.f32.mrb[0].mxu0
        %v1103 = vadd.f32 0.0, %v1102
        %v1104 = vpop.f32.mrb[0].mxu0
        %1105 = vdwg.mxu0
        %v1106 = vadd.f32 %v1010, %v1084
        %v1107 = vadd.f32 %v1013, %v1087
        %v1108 = vadd.f32 %v1018, %v1092
        %v1109 = vadd.f32 %v1021, %v1095
        %v1110 = vadd.f32 %v1026, %v1100
        %v1111 = vadd.f32 %v1029, %v1103
        %s1112 = scalar_lea.vmem %s3, 24
        %v1113 = vld [vmem:[%s1112] sm:$0xf]
        %v1114 = vld [vmem:[%s1112 + $0x4] sm:$0x3]
        %v1121 = vunpack.c.l.b16 %v665
        %v1122 = vunpack.c.l.b16 %v667
        %v1123 = vunpack.c.l.b16 %v669
        %v1124 = vunpack.c.l.b16 %v671
        %v1125 = vunpack.c.l.b16 %v673
        %v1126 = vunpack.c.l.b16 %v675
        %v1127 = vpack.c.b16 %v1122, %v1121
        %v1128 = vpack.c.b16 %v1124, %v1123
        %v1129 = vpack.c.b16 %v1126, %v1125
        %v1132 = vunpack.c.l.b16 %v1113
        %v1133 = vunpack.c.l.b16 %v1114
        %v1134 = vpack.c.b16 %v1133, %v1132
        %v1136 = vsel %vm882, %v1127, 0
        %v1139 = vsel %vm882, %v1128, 0
        %v1142 = vsel %vm882, %v1129, 0
        %v1145 = vsel %vm892, %v1134, 0
        %1147 = vmatprep.subr.bf16.mxu0 0
        %1148 = vmatpush1.bf16.msra.mxu0 %v1145
        %1149 = vmatprep.subr.bf16.mxu0 0
        %1150 = vmatpush1.bf16.msra.mxu0 0
        %1151 = vmatprep.subr.bf16.mxu0 0
        %1152 = vmatpush1.bf16.msra.mxu0 0
        %1153 = vmatprep.subr.bf16.mxu0 0
        %1154 = vmatpush1.bf16.msra.mxu0 0
        %1155 = vmatprep.subr.bf16.mxu0 0
        %1156 = vmatpush1.bf16.msra.mxu0 0
        %1157 = vmatprep.subr.bf16.mxu0 0
        %1158 = vmatpush1.bf16.msra.mxu0 0
        %1159 = vmatprep.subr.bf16.mxu0 0
        %1160 = vmatpush1.bf16.msra.mxu0 0
        %1161 = vmatprep.subr.bf16.mxu0 0
        %1162 = vmatpush1.bf16.msra.mxu0 0
        %1163 = vmatprep.subr.bf16.mxu0 0
        %1164 = vmatpush1.bf16.msra.mxu0 0
        %1165 = vmatprep.subr.bf16.mxu0 0
        %1166 = vmatpush1.bf16.msra.mxu0 0
        %1167 = vmatprep.subr.bf16.mxu0 0
        %1168 = vmatpush1.bf16.msra.mxu0 0
        %1169 = vmatprep.subr.bf16.mxu0 0
        %1170 = vmatpush1.bf16.msra.mxu0 0
        %1171 = vmatprep.subr.bf16.mxu0 0
        %1172 = vmatpush1.bf16.msra.mxu0 0
        %1173 = vmatprep.subr.bf16.mxu0 0
        %1174 = vmatpush1.bf16.msra.mxu0 0
        %1175 = vmatprep.subr.bf16.mxu0 0
        %1176 = vmatpush1.bf16.msra.mxu0 0
        %1177 = vmatprep.subr.bf16.mxu0 0
        %1178 = vmatpush1.bf16.msra.mxu0 0
        %1179 = vmatprep.mubr.bf16.mxu0 0
        %1180 = vmatmul.mubr.bf16.gmra.mrb[0].mxu0 %v1136
        %v1181 = vpop.f32.mrb[0].mxu0
        %v1182 = vadd.f32 0.0, %v1181
        %v1183 = vpop.f32.mrb[0].mxu0
        %v1184 = vpop.f32.mrb[0].mxu0
        %v1185 = vadd.f32 0.0, %v1184
        %v1186 = vpop.f32.mrb[0].mxu0
        %1187 = vmatprep.mubr.bf16.mxu0 0
        %1188 = vmatmul.mubr.bf16.gmra.mrb[0].mxu0 %v1139
        %v1189 = vpop.f32.mrb[0].mxu0
        %v1190 = vadd.f32 0.0, %v1189
        %v1191 = vpop.f32.mrb[0].mxu0
        %v1192 = vpop.f32.mrb[0].mxu0
        %v1193 = vadd.f32 0.0, %v1192
        %v1194 = vpop.f32.mrb[0].mxu0
        %1195 = vmatprep.mubr.bf16.mxu0 0
        %1196 = vmatmul.mubr.bf16.gmra.mrb[0].mxu0 %v1142
        %v1197 = vpop.f32.mrb[0].mxu0
        %v1198 = vadd.f32 0.0, %v1197
        %v1199 = vpop.f32.mrb[0].mxu0
        %v1200 = vpop.f32.mrb[0].mxu0
        %v1201 = vadd.f32 0.0, %v1200
        %v1202 = vpop.f32.mrb[0].mxu0
        %1203 = vdwg.mxu0
        %v1204 = vadd.f32 %v1106, %v1182
        %v1205 = vadd.f32 %v1107, %v1185
        %v1206 = vadd.f32 %v1108, %v1190
        %v1207 = vadd.f32 %v1109, %v1193
        %v1208 = vadd.f32 %v1110, %v1198
        %v1209 = vadd.f32 %v1111, %v1201
        %s1210 = scalar_lea.vmem %s3, 32
        %v1211 = vld [vmem:[%s1210] sm:$0xf]
        %v1212 = vld [vmem:[%s1210 + $0x4] sm:$0x3]
        %v1214 = vunpack.c.l.b16 %v677
        %v1215 = vpack.c.b16 %v1123, %v1122
        %v1216 = vpack.c.b16 %v1125, %v1124
        %v1217 = vpack.c.b16 %v1214, %v1126
        %v1220 = vunpack.c.l.b16 %v1211
        %v1221 = vunpack.c.l.b16 %v1212
        %v1222 = vpack.c.b16 %v1221, %v1220
        %v1224 = vsel %vm882, %v1215, 0
        %v1227 = vsel %vm882, %v1216, 0
        %v1230 = vsel %vm882, %v1217, 0
        %v1233 = vsel %vm892, %v1222, 0
        %1235 = vmatprep.subr.bf16.mxu0 0
        %1236 = vmatpush1.bf16.msra.mxu0 %v1233
        %1237 = vmatprep.subr.bf16.mxu0 0
        %1238 = vmatpush1.bf16.msra.mxu0 0
        %1239 = vmatprep.subr.bf16.mxu0 0
        %1240 = vmatpush1.bf16.msra.mxu0 0
        %1241 = vmatprep.subr.bf16.mxu0 0
        %1242 = vmatpush1.bf16.msra.mxu0 0
        %1243 = vmatprep.subr.bf16.mxu0 0
        %1244 = vmatpush1.bf16.msra.mxu0 0
        %1245 = vmatprep.subr.bf16.mxu0 0
        %1246 = vmatpush1.bf16.msra.mxu0 0
        %1247 = vmatprep.subr.bf16.mxu0 0
        %1248 = vmatpush1.bf16.msra.mxu0 0
        %1249 = vmatprep.subr.bf16.mxu0 0
        %1250 = vmatpush1.bf16.msra.mxu0 0
        %1251 = vmatprep.subr.bf16.mxu0 0
        %1252 = vmatpush1.bf16.msra.mxu0 0
        %1253 = vmatprep.subr.bf16.mxu0 0
        %1254 = vmatpush1.bf16.msra.mxu0 0
        %1255 = vmatprep.subr.bf16.mxu0 0
        %1256 = vmatpush1.bf16.msra.mxu0 0
        %1257 = vmatprep.subr.bf16.mxu0 0
        %1258 = vmatpush1.bf16.msra.mxu0 0
        %1259 = vmatprep.subr.bf16.mxu0 0
        %1260 = vmatpush1.bf16.msra.mxu0 0
        %1261 = vmatprep.subr.bf16.mxu0 0
        %1262 = vmatpush1.bf16.msra.mxu0 0
        %1263 = vmatprep.subr.bf16.mxu0 0
        %1264 = vmatpush1.bf16.msra.mxu0 0
        %1265 = vmatprep.subr.bf16.mxu0 0
        %1266 = vmatpush1.bf16.msra.mxu0 0
        %1267 = vmatprep.mubr.bf16.mxu0 0
        %1268 = vmatmul.mubr.bf16.gmra.mrb[0].mxu0 %v1224
        %v1269 = vpop.f32.mrb[0].mxu0
        %v1270 = vadd.f32 0.0, %v1269
        %v1271 = vpop.f32.mrb[0].mxu0
        %v1272 = vpop.f32.mrb[0].mxu0
        %v1273 = vadd.f32 0.0, %v1272
        %v1274 = vpop.f32.mrb[0].mxu0
        %1275 = vmatprep.mubr.bf16.mxu0 0
        %1276 = vmatmul.mubr.bf16.gmra.mrb[0].mxu0 %v1227
        %v1277 = vpop.f32.mrb[0].mxu0
        %v1278 = vadd.f32 0.0, %v1277
        %v1279 = vpop.f32.mrb[0].mxu0
        %v1280 = vpop.f32.mrb[0].mxu0
        %v1281 = vadd.f32 0.0, %v1280
        %v1282 = vpop.f32.mrb[0].mxu0
        %1283 = vmatprep.mubr.bf16.mxu0 0
        %1284 = vmatmul.mubr.bf16.gmra.mrb[0].mxu0 %v1230
        %v1285 = vpop.f32.mrb[0].mxu0
        %v1286 = vadd.f32 0.0, %v1285
        %v1287 = vpop.f32.mrb[0].mxu0
        %v1288 = vpop.f32.mrb[0].mxu0
        %v1289 = vadd.f32 0.0, %v1288
        %v1290 = vpop.f32.mrb[0].mxu0
        %1291 = vdwg.mxu0
        %v1292 = vadd.f32 %v1204, %v1270
        %v1293 = vadd.f32 %v1205, %v1273
        %v1294 = vadd.f32 %v1206, %v1278
        %v1295 = vadd.f32 %v1207, %v1281
        %v1296 = vadd.f32 %v1208, %v1286
        %v1297 = vadd.f32 %v1209, %v1289
        %s1298 = scalar_lea.vmem %s3, 40
        %v1299 = vld [vmem:[%s1298] sm:$0xf]
        %v1300 = vld [vmem:[%s1298 + $0x4] sm:$0x3]
        %v1302 = vunpack.c.l.b16 %v679
        %v1303 = vpack.c.b16 %v1302, %v1214
        %v1306 = vunpack.c.l.b16 %v1299
        %v1307 = vunpack.c.l.b16 %v1300
        %v1308 = vpack.c.b16 %v1307, %v1306
        %v1310 = vsel %vm882, %v1303, 0
        %v1313 = vsel %vm892, %v1308, 0
        %1315 = vmatprep.subr.bf16.mxu0 0
        %1316 = vmatpush1.bf16.msra.mxu0 %v1313
        %1317 = vmatprep.subr.bf16.mxu0 0
        %1318 = vmatpush1.bf16.msra.mxu0 0
        %1319 = vmatprep.subr.bf16.mxu0 0
        %1320 = vmatpush1.bf16.msra.mxu0 0
        %1321 = vmatprep.subr.bf16.mxu0 0
        %1322 = vmatpush1.bf16.msra.mxu0 0
        %1323 = vmatprep.subr.bf16.mxu0 0
        %1324 = vmatpush1.bf16.msra.mxu0 0
        %1325 = vmatprep.subr.bf16.mxu0 0
        %1326 = vmatpush1.bf16.msra.mxu0 0
        %1327 = vmatprep.subr.bf16.mxu0 0
        %1328 = vmatpush1.bf16.msra.mxu0 0
        %1329 = vmatprep.subr.bf16.mxu0 0
        %1330 = vmatpush1.bf16.msra.mxu0 0
        %1331 = vmatprep.subr.bf16.mxu0 0
        %1332 = vmatpush1.bf16.msra.mxu0 0
        %1333 = vmatprep.subr.bf16.mxu0 0
        %1334 = vmatpush1.bf16.msra.mxu0 0
        %1335 = vmatprep.subr.bf16.mxu0 0
        %1336 = vmatpush1.bf16.msra.mxu0 0
        %1337 = vmatprep.subr.bf16.mxu0 0
        %1338 = vmatpush1.bf16.msra.mxu0 0
        %1339 = vmatprep.subr.bf16.mxu0 0
        %1340 = vmatpush1.bf16.msra.mxu0 0
        %1341 = vmatprep.subr.bf16.mxu0 0
        %1342 = vmatpush1.bf16.msra.mxu0 0
        %1343 = vmatprep.subr.bf16.mxu0 0
        %1344 = vmatpush1.bf16.msra.mxu0 0
        %1345 = vmatprep.subr.bf16.mxu0 0
        %1346 = vmatpush1.bf16.msra.mxu0 0
        %1347 = vmatprep.mubr.bf16.mxu0 0
        %1348 = vmatmul.mubr.bf16.gmra.mrb[0].mxu0 %v1139
        %v1349 = vpop.f32.mrb[0].mxu0
        %v1350 = vadd.f32 0.0, %v1349
        %v1351 = vpop.f32.mrb[0].mxu0
        %v1352 = vpop.f32.mrb[0].mxu0
        %v1353 = vadd.f32 0.0, %v1352
        %v1354 = vpop.f32.mrb[0].mxu0
        %1355 = vmatprep.mubr.bf16.mxu0 0
        %1356 = vmatmul.mubr.bf16.gmra.mrb[0].mxu0 %v1142
        %v1357 = vpop.f32.mrb[0].mxu0
        %v1358 = vadd.f32 0.0, %v1357
        %v1359 = vpop.f32.mrb[0].mxu0
        %v1360 = vpop.f32.mrb[0].mxu0
        %v1361 = vadd.f32 0.0, %v1360
        %v1362 = vpop.f32.mrb[0].mxu0
        %1363 = vmatprep.mubr.bf16.mxu0 0
        %1364 = vmatmul.mubr.bf16.gmra.mrb[0].mxu0 %v1310
        %v1365 = vpop.f32.mrb[0].mxu0
        %v1366 = vadd.f32 0.0, %v1365
        %v1367 = vpop.f32.mrb[0].mxu0
        %v1368 = vpop.f32.mrb[0].mxu0
        %v1369 = vadd.f32 0.0, %v1368
        %v1370 = vpop.f32.mrb[0].mxu0
        %1371 = vdwg.mxu0
        %v1372 = vadd.f32 %v1292, %v1350
        %v1373 = vadd.f32 %v1293, %v1353
        %v1374 = vadd.f32 %v1294, %v1358
        %v1375 = vadd.f32 %v1295, %v1361
        %v1376 = vadd.f32 %v1296, %v1366
        %v1377 = vadd.f32 %v1297, %v1369
        %s1378 = scalar_lea.vmem %s3, 48
        %v1379 = vld [vmem:[%s1378] sm:$0xf]
        %v1380 = vld [vmem:[%s1378 + $0x4] sm:$0x3]
        %v1387 = vunpack.c.l.b16 %v841
        %v1388 = vunpack.c.l.b16 %v843
        %v1389 = vunpack.c.l.b16 %v845
        %v1390 = vunpack.c.l.b16 %v847
        %v1391 = vunpack.c.l.b16 %v849
        %v1392 = vunpack.c.l.b16 %v851
        %v1393 = vpack.c.b16 %v1388, %v1387
        %v1394 = vpack.c.b16 %v1390, %v1389
        %v1395 = vpack.c.b16 %v1392, %v1391
        %v1398 = vunpack.c.l.b16 %v1379
        %v1399 = vunpack.c.l.b16 %v1380
        %v1400 = vpack.c.b16 %v1399, %v1398
        %v1402 = vsel %vm882, %v1393, 0
        %v1405 = vsel %vm882, %v1394, 0
        %v1408 = vsel %vm882, %v1395, 0
        %v1411 = vsel %vm892, %v1400, 0
        %1413 = vmatprep.subr.bf16.mxu0 0
        %1414 = vmatpush1.bf16.msra.mxu0 %v1411
        %1415 = vmatprep.subr.bf16.mxu0 0
        %1416 = vmatpush1.bf16.msra.mxu0 0
        %1417 = vmatprep.subr.bf16.mxu0 0
        %1418 = vmatpush1.bf16.msra.mxu0 0
        %1419 = vmatprep.subr.bf16.mxu0 0
        %1420 = vmatpush1.bf16.msra.mxu0 0
        %1421 = vmatprep.subr.bf16.mxu0 0
        %1422 = vmatpush1.bf16.msra.mxu0 0
        %1423 = vmatprep.subr.bf16.mxu0 0
        %1424 = vmatpush1.bf16.msra.mxu0 0
        %1425 = vmatprep.subr.bf16.mxu0 0
        %1426 = vmatpush1.bf16.msra.mxu0 0
        %1427 = vmatprep.subr.bf16.mxu0 0
        %1428 = vmatpush1.bf16.msra.mxu0 0
        %1429 = vmatprep.subr.bf16.mxu0 0
        %1430 = vmatpush1.bf16.msra.mxu0 0
        %1431 = vmatprep.subr.bf16.mxu0 0
        %1432 = vmatpush1.bf16.msra.mxu0 0
        %1433 = vmatprep.subr.bf16.mxu0 0
        %1434 = vmatpush1.bf16.msra.mxu0 0
        %1435 = vmatprep.subr.bf16.mxu0 0
        %1436 = vmatpush1.bf16.msra.mxu0 0
        %1437 = vmatprep.subr.bf16.mxu0 0
        %1438 = vmatpush1.bf16.msra.mxu0 0
        %1439 = vmatprep.subr.bf16.mxu0 0
        %1440 = vmatpush1.bf16.msra.mxu0 0
        %1441 = vmatprep.subr.bf16.mxu0 0
        %1442 = vmatpush1.bf16.msra.mxu0 0
        %1443 = vmatprep.subr.bf16.mxu0 0
        %1444 = vmatpush1.bf16.msra.mxu0 0
        %1445 = vmatprep.mubr.bf16.mxu0 0
        %1446 = vmatmul.mubr.bf16.gmra.mrb[0].mxu0 %v1402
        %v1447 = vpop.f32.mrb[0].mxu0
        %v1448 = vadd.f32 0.0, %v1447
        %v1449 = vpop.f32.mrb[0].mxu0
        %v1450 = vpop.f32.mrb[0].mxu0
        %v1451 = vadd.f32 0.0, %v1450
        %v1452 = vpop.f32.mrb[0].mxu0
        %1453 = vmatprep.mubr.bf16.mxu0 0
        %1454 = vmatmul.mubr.bf16.gmra.mrb[0].mxu0 %v1405
        %v1455 = vpop.f32.mrb[0].mxu0
        %v1456 = vadd.f32 0.0, %v1455
        %v1457 = vpop.f32.mrb[0].mxu0
        %v1458 = vpop.f32.mrb[0].mxu0
        %v1459 = vadd.f32 0.0, %v1458
        %v1460 = vpop.f32.mrb[0].mxu0
        %1461 = vmatprep.mubr.bf16.mxu0 0
        %1462 = vmatmul.mubr.bf16.gmra.mrb[0].mxu0 %v1408
        %v1463 = vpop.f32.mrb[0].mxu0
        %v1464 = vadd.f32 0.0, %v1463
        %v1465 = vpop.f32.mrb[0].mxu0
        %v1466 = vpop.f32.mrb[0].mxu0
        %v1467 = vadd.f32 0.0, %v1466
        %v1468 = vpop.f32.mrb[0].mxu0
        %1469 = vdwg.mxu0
        %v1470 = vadd.f32 %v1372, %v1448
        %v1471 = vadd.f32 %v1373, %v1451
        %v1472 = vadd.f32 %v1374, %v1456
        %v1473 = vadd.f32 %v1375, %v1459
        %v1474 = vadd.f32 %v1376, %v1464
        %v1475 = vadd.f32 %v1377, %v1467
        %s1476 = scalar_lea.vmem %s3, 56
        %v1477 = vld [vmem:[%s1476] sm:$0xf]
        %v1478 = vld [vmem:[%s1476 + $0x4] sm:$0x3]
        %v1480 = vunpack.c.l.b16 %v853
        %v1481 = vpack.c.b16 %v1389, %v1388
        %v1482 = vpack.c.b16 %v1391, %v1390
        %v1483 = vpack.c.b16 %v1480, %v1392
        %v1486 = vunpack.c.l.b16 %v1477
        %v1487 = vunpack.c.l.b16 %v1478
        %v1488 = vpack.c.b16 %v1487, %v1486
        %v1490 = vsel %vm882, %v1481, 0
        %v1493 = vsel %vm882, %v1482, 0
        %v1496 = vsel %vm882, %v1483, 0
        %v1499 = vsel %vm892, %v1488, 0
        %1501 = vmatprep.subr.bf16.mxu0 0
        %1502 = vmatpush1.bf16.msra.mxu0 %v1499
        %1503 = vmatprep.subr.bf16.mxu0 0
        %1504 = vmatpush1.bf16.msra.mxu0 0
        %1505 = vmatprep.subr.bf16.mxu0 0
        %1506 = vmatpush1.bf16.msra.mxu0 0
        %1507 = vmatprep.subr.bf16.mxu0 0
        %1508 = vmatpush1.bf16.msra.mxu0 0
        %1509 = vmatprep.subr.bf16.mxu0 0
        %1510 = vmatpush1.bf16.msra.mxu0 0
        %1511 = vmatprep.subr.bf16.mxu0 0
        %1512 = vmatpush1.bf16.msra.mxu0 0
        %1513 = vmatprep.subr.bf16.mxu0 0
        %1514 = vmatpush1.bf16.msra.mxu0 0
        %1515 = vmatprep.subr.bf16.mxu0 0
        %1516 = vmatpush1.bf16.msra.mxu0 0
        %1517 = vmatprep.subr.bf16.mxu0 0
        %1518 = vmatpush1.bf16.msra.mxu0 0
        %1519 = vmatprep.subr.bf16.mxu0 0
        %1520 = vmatpush1.bf16.msra.mxu0 0
        %1521 = vmatprep.subr.bf16.mxu0 0
        %1522 = vmatpush1.bf16.msra.mxu0 0
        %1523 = vmatprep.subr.bf16.mxu0 0
        %1524 = vmatpush1.bf16.msra.mxu0 0
        %1525 = vmatprep.subr.bf16.mxu0 0
        %1526 = vmatpush1.bf16.msra.mxu0 0
        %1527 = vmatprep.subr.bf16.mxu0 0
        %1528 = vmatpush1.bf16.msra.mxu0 0
        %1529 = vmatprep.subr.bf16.mxu0 0
        %1530 = vmatpush1.bf16.msra.mxu0 0
        %1531 = vmatprep.subr.bf16.mxu0 0
        %1532 = vmatpush1.bf16.msra.mxu0 0
        %1533 = vmatprep.mubr.bf16.mxu0 0
        %1534 = vmatmul.mubr.bf16.gmra.mrb[0].mxu0 %v1490
        %v1535 = vpop.f32.mrb[0].mxu0
        %v1536 = vadd.f32 0.0, %v1535
        %v1537 = vpop.f32.mrb[0].mxu0
        %v1538 = vpop.f32.mrb[0].mxu0
        %v1539 = vadd.f32 0.0, %v1538
        %v1540 = vpop.f32.mrb[0].mxu0
        %1541 = vmatprep.mubr.bf16.mxu0 0
        %1542 = vmatmul.mubr.bf16.gmra.mrb[0].mxu0 %v1493
        %v1543 = vpop.f32.mrb[0].mxu0
        %v1544 = vadd.f32 0.0, %v1543
        %v1545 = vpop.f32.mrb[0].mxu0
        %v1546 = vpop.f32.mrb[0].mxu0
        %v1547 = vadd.f32 0.0, %v1546
        %v1548 = vpop.f32.mrb[0].mxu0
        %1549 = vmatprep.mubr.bf16.mxu0 0
        %1550 = vmatmul.mubr.bf16.gmra.mrb[0].mxu0 %v1496
        %v1551 = vpop.f32.mrb[0].mxu0
        %v1552 = vadd.f32 0.0, %v1551
        %v1553 = vpop.f32.mrb[0].mxu0
        %v1554 = vpop.f32.mrb[0].mxu0
        %v1555 = vadd.f32 0.0, %v1554
        %v1556 = vpop.f32.mrb[0].mxu0
        %1557 = vdwg.mxu0
        %v1558 = vadd.f32 %v1470, %v1536
        %v1559 = vadd.f32 %v1471, %v1539
        %v1560 = vadd.f32 %v1472, %v1544
        %v1561 = vadd.f32 %v1473, %v1547
        %v1562 = vadd.f32 %v1474, %v1552
        %v1563 = vadd.f32 %v1475, %v1555
        %s1564 = scalar_lea.vmem %s3, 64
        %v1565 = vld [vmem:[%s1564] sm:$0xf]
        %v1566 = vld [vmem:[%s1564 + $0x4] sm:$0x3]
        %v1568 = vunpack.c.l.b16 %v855
        %v1569 = vpack.c.b16 %v1568, %v1480
        %v1572 = vunpack.c.l.b16 %v1565
        %v1573 = vunpack.c.l.b16 %v1566
        %v1574 = vpack.c.b16 %v1573, %v1572
        %v1576 = vsel %vm882, %v1569, 0
        %v1579 = vsel %vm892, %v1574, 0
        %1581 = vmatprep.subr.bf16.mxu0 0
        %1582 = vmatpush1.bf16.msra.mxu0 %v1579
        %1583 = vmatprep.subr.bf16.mxu0 0
        %1584 = vmatpush1.bf16.msra.mxu0 0
        %1585 = vmatprep.subr.bf16.mxu0 0
        %1586 = vmatpush1.bf16.msra.mxu0 0
        %1587 = vmatprep.subr.bf16.mxu0 0
        %1588 = vmatpush1.bf16.msra.mxu0 0
        %1589 = vmatprep.subr.bf16.mxu0 0
        %1590 = vmatpush1.bf16.msra.mxu0 0
        %1591 = vmatprep.subr.bf16.mxu0 0
        %1592 = vmatpush1.bf16.msra.mxu0 0
        %1593 = vmatprep.subr.bf16.mxu0 0
        %1594 = vmatpush1.bf16.msra.mxu0 0
        %1595 = vmatprep.subr.bf16.mxu0 0
        %1596 = vmatpush1.bf16.msra.mxu0 0
        %1597 = vmatprep.subr.bf16.mxu0 0
        %1598 = vmatpush1.bf16.msra.mxu0 0
        %1599 = vmatprep.subr.bf16.mxu0 0
        %1600 = vmatpush1.bf16.msra.mxu0 0
        %1601 = vmatprep.subr.bf16.mxu0 0
        %1602 = vmatpush1.bf16.msra.mxu0 0
        %1603 = vmatprep.subr.bf16.mxu0 0
        %1604 = vmatpush1.bf16.msra.mxu0 0
        %1605 = vmatprep.subr.bf16.mxu0 0
        %1606 = vmatpush1.bf16.msra.mxu0 0
        %1607 = vmatprep.subr.bf16.mxu0 0
        %1608 = vmatpush1.bf16.msra.mxu0 0
        %1609 = vmatprep.subr.bf16.mxu0 0
        %1610 = vmatpush1.bf16.msra.mxu0 0
        %1611 = vmatprep.subr.bf16.mxu0 0
        %1612 = vmatpush1.bf16.msra.mxu0 0
        %1613 = vmatprep.mubr.bf16.mxu0 0
        %1614 = vmatmul.mubr.bf16.gmra.mrb[0].mxu0 %v1405
        %v1615 = vpop.f32.mrb[0].mxu0
        %v1616 = vadd.f32 0.0, %v1615
        %v1617 = vpop.f32.mrb[0].mxu0
        %v1618 = vpop.f32.mrb[0].mxu0
        %v1619 = vadd.f32 0.0, %v1618
        %v1620 = vpop.f32.mrb[0].mxu0
        %1621 = vmatprep.mubr.bf16.mxu0 0
        %1622 = vmatmul.mubr.bf16.gmra.mrb[0].mxu0 %v1408
        %v1623 = vpop.f32.mrb[0].mxu0
        %v1624 = vadd.f32 0.0, %v1623
        %v1625 = vpop.f32.mrb[0].mxu0
        %v1626 = vpop.f32.mrb[0].mxu0
        %v1627 = vadd.f32 0.0, %v1626
        %v1628 = vpop.f32.mrb[0].mxu0
        %1629 = vmatprep.mubr.bf16.mxu0 0
        %1630 = vmatmul.mubr.bf16.gmra.mrb[0].mxu0 %v1576
        %v1631 = vpop.f32.mrb[0].mxu0
        %v1632 = vadd.f32 0.0, %v1631
        %v1633 = vpop.f32.mrb[0].mxu0
        %v1634 = vpop.f32.mrb[0].mxu0
        %v1635 = vadd.f32 0.0, %v1634
        %v1636 = vpop.f32.mrb[0].mxu0
        %1637 = vdwg.mxu0
        %v1638 = vadd.f32 %v1558, %v1616
        %v1639 = vadd.f32 %v1559, %v1619
        %v1640 = vadd.f32 %v1560, %v1624
        %v1641 = vadd.f32 %v1561, %v1627
        %v1642 = vadd.f32 %v1562, %v1632
        %v1643 = vadd.f32 %v1563, %v1635
        %v1645 = vlaneseq
        %v1646 = vshrl.u32 %v1645, 7
        %v1647 = vsub.s32 0, %v1646
        %v1648 = vrot.slane %v856, %v1647
        %v1650 = vadd.f32 %v1638, %v1648
        %v1651 = vadd.f32 %v1639, %v1648
        %v1652 = vadd.f32 %v1640, %v1648
        %v1653 = vadd.f32 %v1641, %v1648
        %v1654 = vadd.f32 %v1642, %v1648
        %v1655 = vadd.f32 %v1643, %v1648
        %v1656 = vmax.f32 %v1650, 0.0
        %v1657 = vmax.f32 %v1651, 0.0
        %v1658 = vmax.f32 %v1652, 0.0
        %v1659 = vmax.f32 %v1653, 0.0
        %v1660 = vmax.f32 %v1654, 0.0
        %v1661 = vmax.f32 %v1655, 0.0
        %v1662 = vpack.c.bf16 %v1656, %v1656
        %v1663 = vpack.c.bf16 %v1657, %v1657
        %v1664 = vpack.c.bf16 %v1658, %v1658
        %v1665 = vpack.c.bf16 %v1659, %v1659
        %v1666 = vpack.c.bf16 %v1660, %v1660
        %v1667 = vpack.c.bf16 %v1661, %v1661
        %vm1668 = vcmask 125952
        %1669 = vst.msk [vmem:[%s257] sm:$0xf] %vm1668, %v1662
        %1670 = vst.msk [vmem:[%s257 + $0x4] sm:$0xf] %vm1668, %v1663
        %1671 = vst.msk [vmem:[%s257 + $0x8] sm:$0xf] %vm1668, %v1664
        %1672 = vst.msk [vmem:[%s257 + $0xc] sm:$0xf] %vm1668, %v1665
        %1673 = vst.msk [vmem:[%s257 + $0x10] sm:$0xf] %vm1668, %v1666
        %1674 = vst.msk [vmem:[%s257 + $0x14] sm:$0xf] %vm1668, %v1667
        %s1675 = sand.u32 %s151, 1
        %s1676 = scalar_lea.sflag [#allocation3], %s1675
        %s1677 = sand.u32 %s151, 1
        %s1678 = smul.addr %s1677, 24
        %s1679 = scalar_lea.vmem [#allocation2], %s1678
        // Predicated region
        $region41: #{tpu_custom_call.1} parent=39 // pred_check
          %p1680 = pneg %p161
        $region42: #{tpu_custom_call.1} parent=39 // pred_check_branch
          %1682 = sbr.rel (%p1680) target = $region44
        $region43: #{tpu_custom_call.1} parent=39 // pred_region
          %s1684 = ssub.s32 384, 384
          %1685 = vsyncadd %s1676, %s1684
          %s1686 = smul.addr %s19, 6
          %s1687 = smul.addr %s1686, 64
          %s1688 = scalar_lea.hbm %s5, %s1687
          %s1689 = sshll.u32 %s1679, 4
          %s1690 = int_to_ptr.vmem [resolvable:$true] %s1689
          %1695 = dma.vmem_to_hbm [thread:$0]  %s1690, 384, %s1688, %s1676, 64, 64, 4
        $region44: #{tpu_custom_call.1} parent=39 // pred_fallthru
          _
      $region40: #{tpu_custom_call.1} parent=5 // pred_fallthru
        _
      %p1696 = scmp.le.s32.totalorder 2, %s14
      // Predicated region
      $region45: #{tpu_custom_call.1} parent=5 // pred_check
        %p1697 = pneg %p1696
      $region46: #{tpu_custom_call.1} parent=5 // pred_check_branch
        %1699 = sbr.rel (%p1697) target = $region48
      $region47: #{tpu_custom_call.1} parent=5 // pred_region
        %s1700 = ssub.s32 %s14, 2
        // Predicated region
        $region49: #{tpu_custom_call.1} parent=47 // pred_check
          %p1701 = pneg %p167
        $region50: #{tpu_custom_call.1} parent=47 // pred_check_branch
          %1703 = sbr.rel (%p1701) target = $region52
        $region51: #{tpu_custom_call.1} parent=47 // pred_region
          %s1704 = sand.u32 %s152, 1
          %s1705 = scalar_lea.sflag [#allocation3], %s1704
          %s1706 = sand.u32 %s152, 1
          %s1707 = smul.addr %s1706, 24
          %s1708 = scalar_lea.vmem [#allocation2], %s1707
          %1709 = dma.done %s1705, 384
        $region52: #{tpu_custom_call.1} parent=47 // pred_fallthru
          _
      $region48: #{tpu_custom_call.1} parent=5 // pred_fallthru
        _
    $region6: #{tpu_custom_call.1} parent=1 // loop_footer
      %s18 = sadd.s32 1, %s14
    $region7: #{tpu_custom_call.1} parent=1 // loop_footer_branch
      %13 = sbr.rel target = $region3
    $region8: #{tpu_custom_call.1} parent=1 // loop_exit
      _
    %1710 = vsyncpa [#allocation3], 1
    %s1711 = scalar_lea.sflag [#allocation3], 1
    %1712 = vsyncpa %s1711, 1

</llo_original>
